<compile_context>
chip_gen: v6e
topology: v6e:2x2x1
jax: 0.10.0
libtpu: 0.0.40
codegen_flags: <defaults>
</compile_context>

<pallas_src>
import jax
import jax.numpy as jnp
from jax.experimental import pallas as pl
from jax.experimental.pallas import tpu as pltpu

NEG_SLOPE = 0.01  # nn.LeakyReLU() default


def _leaky_relu(x):
    # max(x, a*x) == leaky_relu for 0 < a < 1; one vmul+vmax instead of cmp+sel.
    return jnp.maximum(x, NEG_SLOPE * x)


def _cdiv(a, b):
    return -(-a // b)


def _round_up(n, m):
    return ((n + m - 1) // m) * m


def mlp_kernel(x_ref,
               w1_ref, b1_ref,
               w2_ref, b2_ref,
               w3_ref, b3_ref,
               w4_ref, b4_ref,
               out_ref):
    # bf16 operands into the MXU (full rate: 197/918/996 TF/s on v5e/v6e/v7x),
    # f32 accumulation; all elementwise work stays f32.
    h = jnp.dot(x_ref[...].astype(jnp.bfloat16), w1_ref[...],
                preferred_element_type=jnp.float32) + b1_ref[...]
    h = _leaky_relu(h)
    h = jnp.dot(h.astype(jnp.bfloat16), w2_ref[...],
                preferred_element_type=jnp.float32) + b2_ref[...]
    h = _leaky_relu(h)
    h = jnp.dot(h.astype(jnp.bfloat16), w3_ref[...],
                preferred_element_type=jnp.float32) + b3_ref[...]
    h = _leaky_relu(h)                                              # (TB, 1024) f32

    # Final layer has out_features=1: VPU broadcast-mul + XLU lane reduction
    # instead of pushing a nearly-empty vmatmul through the MXU.
    w4_row = w4_ref[...].astype(jnp.float32)                        # (1, 1024)
    o = jnp.sum(h * w4_row, axis=-1, keepdims=True) + b4_ref[0, 0]  # (TB, 1)

    # Lane-dense store: broadcast the scalar column across 128 lanes; the
    # wrapper slices column 0.
    # TODO(synk): pack 128 batch scalars per output row ((TB,1)->(TB/128,128))
    # to kill the 128x write amplification (v5e win); skipped because that
    # relayout reshape is not guaranteed to lower in Mosaic.
    out_ref[...] = jnp.broadcast_to(o, out_ref.shape).astype(out_ref.dtype)


def meta_classifier_forward(metrics, params, *, tb_max=1024):
    """metrics: (B, input_size) f32.  Returns (B,) f32 (== nn.Flatten(start_dim=0))."""
    B, in_size = metrics.shape
    (w1, b1), (w2, b2), (w3, b3), (w4, b4) = params

    # bf16 weights: half the HBM weight traffic and native MXU bf16 operands.
    w1b = w1.astype(jnp.bfloat16)
    w2b = w2.astype(jnp.bfloat16)
    w3b = w3.astype(jnp.bfloat16)
    w4_row = w4.reshape(1, -1).astype(jnp.bfloat16)   # (1, 1024), lane-dense
    b1 = b1.astype(jnp.float32)
    b2 = b2.astype(jnp.float32)
    b3 = b3.astype(jnp.float32)
    b4s = b4.reshape(1, 1).astype(jnp.float32)        # SMEM scalar

    # Adaptive batch tiling: tiles up to tb_max rows amortize per-step pipeline
    # overhead; nb is chosen so padding waste stays < 8 rows per tile and large
    # batches yield >= 2-4 tiles (>= 2 per v7x TensorCore under "parallel").
    nb = max(_cdiv(B, tb_max), min(4, _cdiv(B, 512)), 1)
    tb = _round_up(_cdiv(B, nb), 8)
    B_pad = nb * tb
    if B_pad != B:
        metrics = jnp.pad(metrics, ((0, B_pad - B), (0, 0)))

    flops = 2 * B_pad * (in_size * 256 + 256 * 512 + 512 * 1024 + 1024)
    bytes_accessed = (
        (w1b.size + w2b.size + w3b.size + w4_row.size) * 2   # bf16 weights (resident)
        + (b1.size + b2.size + b3.size + b4s.size) * 4        # f32 biases
        + B_pad * in_size * 4                                  # input
        + B_pad * 128 * 4                                      # lane-dense output
    )

    def resident(shape):
        # Whole-array block, same block index every grid step -> stays
        # VMEM-resident, DMA'd once.
        # NOTE: pipeline_mode=pl.Buffered(1) would halve these blocks' VMEM
        # footprint (~1.7 MiB); omitted for lowering safety.
        return pl.BlockSpec(shape, lambda i: (0, 0))

    out2d = pl.pallas_call(
        mlp_kernel,
        out_shape=jax.ShapeDtypeStruct((B_pad, 128), jnp.float32),
        grid=(nb,),
        in_specs=[
            pl.BlockSpec((tb, in_size), lambda i: (i, 0)),     # x tile
            resident(w1b.shape), resident(b1.shape),
            resident(w2b.shape), resident(b2.shape),
            resident(w3b.shape), resident(b3.shape),
            resident(w4_row.shape),
            pl.BlockSpec(memory_space=pltpu.SMEM),             # b4 scalar
        ],
        out_specs=pl.BlockSpec((tb, 128), lambda i: (i, 0)),
        compiler_params=pltpu.CompilerParams(
            dimension_semantics=("parallel",),   # batch tiles shard over v7x's 2 TCs
            vmem_limit_bytes=48 << 20,           # ~14 MiB actual @ tb=1024; < 64 MiB v7x VMEM
        ),
        cost_estimate=pl.CostEstimate(
            flops=flops, transcendentals=0, bytes_accessed=bytes_accessed),
    )(metrics, w1b, b1, w2b, b2, w3b, b3, w4_row, b4s)

    # nn.Flatten(start_dim=0): take the scalar column, drop batch padding.
    return out2d[:B, 0]


def init_params(key, input_size):
    """Deterministic synthetic init (torch's init_weights is not defined in the
    spec; shapes match the torch module, weights stored as (in, out))."""
    dims = [input_size, 256, 512, 1024, 1]
    params = []
    for i in range(4):
        key, kw, kb = jax.random.split(key, 3)
        fan_in, fan_out = dims[i], dims[i + 1]
        scale = 1.0 / jnp.sqrt(jnp.float32(fan_in))
        w = jax.random.uniform(kw, (fan_in, fan_out), jnp.float32, -scale, scale)
        b = jax.random.uniform(kb, (1, fan_out), jnp.float32, -scale, scale)
        params.append((w, b))
    return params


def reference_forward(metrics, params):
    # Plain-JAX reference mirroring the kernel's numerics:
    # bf16 MXU operands, f32 accumulation / elementwise.
    (w1, b1), (w2, b2), (w3, b3), (w4, b4) = params
    h = metrics
    for (w, b) in ((w1, b1), (w2, b2), (w3, b3)):
        h = jnp.dot(h.astype(jnp.bfloat16), w.astype(jnp.bfloat16),
                    preferred_element_type=jnp.float32) + b
        h = jnp.where(h > 0, h, NEG_SLOPE * h)
    w4q = w4.astype(jnp.bfloat16).astype(jnp.float32).reshape(1, -1)
    o = jnp.sum(h * w4q, axis=-1, keepdims=True) + b4.reshape(1, 1)
    return o.reshape(-1)


if __name__ == "__main__":
    key = jax.random.PRNGKey(0)
    key, kx = jax.random.split(key)

    B, INPUT_SIZE = 8, 32
    metrics = jax.random.normal(kx, (B, INPUT_SIZE), jnp.float32)
    params = init_params(key, INPUT_SIZE)

    out = jax.block_until_ready(meta_classifier_forward(metrics, params))
    ref = reference_forward(metrics, params)

    assert out.shape == (B,), out.shape
    assert jnp.allclose(out, ref, atol=2e-3, rtol=2e-3), (out, ref)

    print("KERNEL_OK")
</pallas_src>

<mosaic_0001>
module attributes {stable_mosaic.version = 11 : i64} {
  func.func @mlp_kernel(%arg0: i32, %arg1: memref<8x32xf32, #tpu.memory_space<vmem>>, %arg2: memref<32x256xbf16, #tpu.memory_space<vmem>>, %arg3: memref<1x256xf32, #tpu.memory_space<vmem>>, %arg4: memref<256x512xbf16, #tpu.memory_space<vmem>>, %arg5: memref<1x512xf32, #tpu.memory_space<vmem>>, %arg6: memref<512x1024xbf16, #tpu.memory_space<vmem>>, %arg7: memref<1x1024xf32, #tpu.memory_space<vmem>>, %arg8: memref<1x1024xbf16, #tpu.memory_space<vmem>>, %arg9: memref<1x1xf32, #tpu.memory_space<smem>>, %arg10: memref<8x128xf32, #tpu.memory_space<vmem>>) attributes {dimension_semantics = [#tpu.dimension_semantics<parallel>], iteration_bounds = array<i64: 1>, scalar_prefetch = 0 : i64, scratch_operands = 0 : i64, tpu.core_type = #tpu.core_type<tc>, window_params = [{transform_indices = @transform_0, window_bounds = array<i64: 8, 32>}, {pipeline_mode = #tpu.pipeline_mode<synchronous>, transform_indices = @transform_1, window_bounds = array<i64: 32, 256>}, {pipeline_mode = #tpu.pipeline_mode<synchronous>, transform_indices = @transform_2, window_bounds = array<i64: 1, 256>}, {pipeline_mode = #tpu.pipeline_mode<synchronous>, transform_indices = @transform_3, window_bounds = array<i64: 256, 512>}, {pipeline_mode = #tpu.pipeline_mode<synchronous>, transform_indices = @transform_4, window_bounds = array<i64: 1, 512>}, {pipeline_mode = #tpu.pipeline_mode<synchronous>, transform_indices = @transform_5, window_bounds = array<i64: 512, 1024>}, {pipeline_mode = #tpu.pipeline_mode<synchronous>, transform_indices = @transform_6, window_bounds = array<i64: 1, 1024>}, {pipeline_mode = #tpu.pipeline_mode<synchronous>, transform_indices = @transform_7, window_bounds = array<i64: 1, 1024>}, {transform_indices = @transform_8, window_bounds = array<i64: 1, 1>}, {transform_indices = @transform_9, window_bounds = array<i64: 8, 128>}]} {
    %c0 = arith.constant 0 : index
    %c0_0 = arith.constant 0 : index
    %0 = vector.load %arg1[%c0, %c0_0] : memref<8x32xf32, #tpu.memory_space<vmem>>, vector<8x32xf32>
    %1 = arith.truncf %0 : vector<8x32xf32> to vector<8x32xbf16>
    %c0_1 = arith.constant 0 : index
    %c0_2 = arith.constant 0 : index
    %2 = vector.load %arg2[%c0_1, %c0_2] : memref<32x256xbf16, #tpu.memory_space<vmem>>, vector<32x256xbf16>
    %cst = arith.constant dense<0.000000e+00> : vector<8x256xf32>
    %3 = tpu.matmul %1, %2, %cst {dimension_numbers = #tpu.dot_dimension_numbers<[1], [0], [0], [1], [0, 0, 1, 1], [], []>} : vector<8x32xbf16>, vector<32x256xbf16>, vector<8x256xf32> -> vector<8x256xf32>
    %c0_3 = arith.constant 0 : index
    %c0_4 = arith.constant 0 : index
    %4 = vector.load %arg3[%c0_3, %c0_4] : memref<1x256xf32, #tpu.memory_space<vmem>>, vector<1x256xf32>
    %5 = vector.broadcast %4 : vector<1x256xf32> to vector<8x256xf32>
    %6 = arith.addf %3, %5 : vector<8x256xf32>
    %cst_5 = arith.constant 0.00999999977 : f32
    %7 = vector.broadcast %cst_5 : f32 to vector<8x256xf32>
    %8 = arith.mulf %7, %6 : vector<8x256xf32>
    %9 = arith.maximumf %6, %8 : vector<8x256xf32>
    %10 = arith.truncf %9 : vector<8x256xf32> to vector<8x256xbf16>
    %c0_6 = arith.constant 0 : index
    %c0_7 = arith.constant 0 : index
    %11 = vector.load %arg4[%c0_6, %c0_7] : memref<256x512xbf16, #tpu.memory_space<vmem>>, vector<256x512xbf16>
    %cst_8 = arith.constant dense<0.000000e+00> : vector<8x512xf32>
    %12 = tpu.matmul %10, %11, %cst_8 {dimension_numbers = #tpu.dot_dimension_numbers<[1], [0], [0], [1], [0, 0, 1, 1], [], []>} : vector<8x256xbf16>, vector<256x512xbf16>, vector<8x512xf32> -> vector<8x512xf32>
    %c0_9 = arith.constant 0 : index
    %c0_10 = arith.constant 0 : index
    %13 = vector.load %arg5[%c0_9, %c0_10] : memref<1x512xf32, #tpu.memory_space<vmem>>, vector<1x512xf32>
    %14 = vector.broadcast %13 : vector<1x512xf32> to vector<8x512xf32>
    %15 = arith.addf %12, %14 : vector<8x512xf32>
    %cst_11 = arith.constant 0.00999999977 : f32
    %16 = vector.broadcast %cst_11 : f32 to vector<8x512xf32>
    %17 = arith.mulf %16, %15 : vector<8x512xf32>
    %18 = arith.maximumf %15, %17 : vector<8x512xf32>
    %19 = arith.truncf %18 : vector<8x512xf32> to vector<8x512xbf16>
    %c0_12 = arith.constant 0 : index
    %c0_13 = arith.constant 0 : index
    %20 = vector.load %arg6[%c0_12, %c0_13] : memref<512x1024xbf16, #tpu.memory_space<vmem>>, vector<512x1024xbf16>
    %cst_14 = arith.constant dense<0.000000e+00> : vector<8x1024xf32>
    %21 = tpu.matmul %19, %20, %cst_14 {dimension_numbers = #tpu.dot_dimension_numbers<[1], [0], [0], [1], [0, 0, 1, 1], [], []>} : vector<8x512xbf16>, vector<512x1024xbf16>, vector<8x1024xf32> -> vector<8x1024xf32>
    %c0_15 = arith.constant 0 : index
    %c0_16 = arith.constant 0 : index
    %22 = vector.load %arg7[%c0_15, %c0_16] : memref<1x1024xf32, #tpu.memory_space<vmem>>, vector<1x1024xf32>
    %23 = vector.broadcast %22 : vector<1x1024xf32> to vector<8x1024xf32>
    %24 = arith.addf %21, %23 : vector<8x1024xf32>
    %cst_17 = arith.constant 0.00999999977 : f32
    %25 = vector.broadcast %cst_17 : f32 to vector<8x1024xf32>
    %26 = arith.mulf %25, %24 : vector<8x1024xf32>
    %27 = arith.maximumf %24, %26 : vector<8x1024xf32>
    %c0_18 = arith.constant 0 : index
    %c0_19 = arith.constant 0 : index
    %28 = vector.load %arg8[%c0_18, %c0_19] : memref<1x1024xbf16, #tpu.memory_space<vmem>>, vector<1x1024xbf16>
    %29 = arith.extf %28 : vector<1x1024xbf16> to vector<1x1024xf32>
    %30 = vector.broadcast %29 : vector<1x1024xf32> to vector<8x1024xf32>
    %31 = arith.mulf %27, %30 : vector<8x1024xf32>
    %cst_20 = arith.constant dense<0.000000e+00> : vector<8xf32>
    %32 = vector.multi_reduction <add>, %31, %cst_20 [1] : vector<8x1024xf32> to vector<8xf32>
    %33 = vector.shape_cast %32 : vector<8xf32> to vector<8x1xf32>
    %c0_21 = arith.constant 0 : index
    %c0_22 = arith.constant 0 : index
    %34 = memref.load %arg9[%c0_21, %c0_22] : memref<1x1xf32, #tpu.memory_space<smem>>
    %35 = vector.broadcast %34 : f32 to vector<8x1xf32>
    %36 = arith.addf %33, %35 : vector<8x1xf32>
    %37 = vector.shape_cast %36 : vector<8x1xf32> to vector<8x1xf32>
    %38 = vector.broadcast %37 : vector<8x1xf32> to vector<8x128xf32>
    %c0_23 = arith.constant 0 : index
    %c0_24 = arith.constant 0 : index
    %39 = vector.load %arg10[%c0_23, %c0_24] : memref<8x128xf32, #tpu.memory_space<vmem>>, vector<8x128xf32>
    tpu.vector_store %arg10[%c0_23, %c0_24], %38 {strides = array<i32>} : memref<8x128xf32, #tpu.memory_space<vmem>>, vector<8x128xf32>,
    return
  }
  func.func @transform_0(%arg0: i32) -> (i32, i32) {
    %c0_i32 = arith.constant 0 : i32
    %c0_i32_0 = arith.constant 0 : i32
    return %arg0, %c0_i32 : i32, i32
  }
  func.func @transform_1(%arg0: i32) -> (i32, i32) {
    %c0_i32 = arith.constant 0 : i32
    %c0_i32_0 = arith.constant 0 : i32
    %c0_i32_1 = arith.constant 0 : i32
    return %c0_i32, %c0_i32_0 : i32, i32
  }
  func.func @transform_2(%arg0: i32) -> (i32, i32) {
    %c0_i32 = arith.constant 0 : i32
    %c0_i32_0 = arith.constant 0 : i32
    %c0_i32_1 = arith.constant 0 : i32
    return %c0_i32, %c0_i32_0 : i32, i32
  }
  func.func @transform_3(%arg0: i32) -> (i32, i32) {
    %c0_i32 = arith.constant 0 : i32
    %c0_i32_0 = arith.constant 0 : i32
    %c0_i32_1 = arith.constant 0 : i32
    return %c0_i32, %c0_i32_0 : i32, i32
  }
  func.func @transform_4(%arg0: i32) -> (i32, i32) {
    %c0_i32 = arith.constant 0 : i32
    %c0_i32_0 = arith.constant 0 : i32
    %c0_i32_1 = arith.constant 0 : i32
    return %c0_i32, %c0_i32_0 : i32, i32
  }
  func.func @transform_5(%arg0: i32) -> (i32, i32) {
    %c0_i32 = arith.constant 0 : i32
    %c0_i32_0 = arith.constant 0 : i32
    %c0_i32_1 = arith.constant 0 : i32
    return %c0_i32, %c0_i32_0 : i32, i32
  }
  func.func @transform_6(%arg0: i32) -> (i32, i32) {
    %c0_i32 = arith.constant 0 : i32
    %c0_i32_0 = arith.constant 0 : i32
    %c0_i32_1 = arith.constant 0 : i32
    return %c0_i32, %c0_i32_0 : i32, i32
  }
  func.func @transform_7(%arg0: i32) -> (i32, i32) {
    %c0_i32 = arith.constant 0 : i32
    %c0_i32_0 = arith.constant 0 : i32
    %c0_i32_1 = arith.constant 0 : i32
    return %c0_i32, %c0_i32_0 : i32, i32
  }
  func.func @transform_8(%arg0: i32) -> (i32, i32) {
    %c0_i32 = arith.constant 0 : i32
    %c0_i32_0 = arith.constant 0 : i32
    %c0_i32_1 = arith.constant 0 : i32
    return %c0_i32, %c0_i32_0 : i32, i32
  }
  func.func @transform_9(%arg0: i32) -> (i32, i32) {
    %c0_i32 = arith.constant 0 : i32
    %c0_i32_0 = arith.constant 0 : i32
    return %arg0, %c0_i32 : i32, i32
  }
}

</mosaic_0001>

<llo_original>
// kernel: tpu_custom_call.1
$region0: #{tpu_custom_call.1}
  #allocation0 [shape = 'u32[]', space=smem, size = 0x4, offset = 0x4, fixed_abs, tag = 'smem constant byte address 0x4 - core index']
  #allocation1 [shape = 'u32[144,128]{1,0:T(1,128)}', space=vmem, size = 0x12000, scoped, tag = 'internal scratch']
  #allocation2 [shape = 'f32[1,1]{1,0:T(1,128)S(6)}', space=smem, size = 0x200, scoped, tag = 'scoped memory for tpu_custom_call.1']
  %s0 = inlined_call_operand.hbm [shape: f32[8,32], index: 0, kind: input, shape index: {}]
  %s1 = inlined_call_operand.hbm [shape: bf16[32,256], index: 1, kind: input, shape index: {}]
  %s2 = inlined_call_operand.hbm [shape: f32[1,256], index: 2, kind: input, shape index: {}]
  %s3 = inlined_call_operand.hbm [shape: bf16[256,512], index: 3, kind: input, shape index: {}]
  %s4 = inlined_call_operand.vmem [shape: f32[1,512], index: 4, kind: input, shape index: {}]
  %s5 = inlined_call_operand.hbm [shape: bf16[512,1024], index: 5, kind: input, shape index: {}]
  %s6 = inlined_call_operand.vmem [shape: f32[1,1024], index: 6, kind: input, shape index: {}]
  %s7 = inlined_call_operand.hbm [shape: bf16[1,1024], index: 7, kind: input, shape index: {}]
  %s8 = inlined_call_operand.<no memory space> [shape: f32[1,1], index: 8, kind: input, shape index: {}]
  %s9 = inlined_call_operand.hbm [shape: f32[8,128], index: 9, kind: output, shape index: {}]
  %s10 = sld [smem:[#allocation0]]
  $region70: #{tpu_custom_call.1} parent=0
    _
  %s12 = ssub.s32 1, %s10
  %s13 = scalar_select 0, %s12, %s10
  %14 = sst [smem:[#allocation2]] %s8
  $region1: #{tpu_custom_call.1} parent=0
    #allocation3 [shape = 'u8[4096]{0}', space=vmem, size = 0x1000, scoped, tag = 'input window, operand 0, single buffered']
    #allocation4 [shape = 's32[1]{0}', space=sflag, size = 0x4, scoped, tag = 'scoped memory for tpu_custom_call.1']
    #allocation5 [shape = 's32[1]{0}', space=sflag, size = 0x4, scoped, tag = 'scoped memory for tpu_custom_call.1']
    #allocation6 [shape = 'u8[16384]{0}', space=vmem, size = 0x4000, scoped, tag = 'input window, operand 1, single buffered']
    #allocation7 [shape = 's32[1]{0}', space=sflag, size = 0x4, scoped, tag = 'scoped memory for tpu_custom_call.1']
    #allocation8 [shape = 'u8[1024]{0}', space=vmem, size = 0x400, scoped, tag = 'input window, operand 2, single buffered']
    #allocation9 [shape = 'u8[262144]{0}', space=vmem, size = 0x40000, scoped, tag = 'input window, operand 3, single buffered']
    #allocation10 [shape = 's32[1]{0}', space=sflag, size = 0x4, scoped, tag = 'scoped memory for tpu_custom_call.1']
    #allocation11 [shape = 'u8[1048576]{0}', space=vmem, size = 0x100000, scoped, tag = 'input window, operand 5, single buffered']
    #allocation12 [shape = 'u8[4096]{0}', space=vmem, size = 0x1000, scoped, tag = 'input window, operand 7, single buffered']
    #allocation13 [shape = 's32[1]{0}', space=sflag, size = 0x4, scoped, tag = 'scoped memory for tpu_custom_call.1']
    #allocation14 [shape = 'u8[4096]{0}', space=vmem, size = 0x1000, scoped, tag = 'output window, operand 0, single buffered']
    %15 = vsyncpa [#allocation4], 0
    %16 = vsyncpa [#allocation7], 0
    %17 = vsyncpa [#allocation10], 0
    %18 = vsyncpa [#allocation13], 0
    %19 = vsyncpa [#allocation5], 0
    // Predicated region
    $region2: #{tpu_custom_call.1} parent=1 // pred_check
      _
    $region3: #{tpu_custom_call.1} parent=1 // pred_check_branch
      %21 = sbr.rel (0) target = $region5
    $region4: #{tpu_custom_call.1} parent=1 // pred_region
      %s23 = ssub.s32 128, 128
      %24 = vsyncadd [#allocation4], %s23
      %s26 = sshll.u32 [#allocation3], 4
      %s27 = int_to_ptr.vmem [resolvable:$true] %s26
      %29 = dma.hbm_to_vmem [thread:$0]  %s0, 128, %s27, [#allocation4]
    $region5: #{tpu_custom_call.1} parent=1 // pred_fallthru
      _
    // Predicated region
    $region6: #{tpu_custom_call.1} parent=1 // pred_check
      _
    $region7: #{tpu_custom_call.1} parent=1 // pred_check_branch
      %31 = sbr.rel (0) target = $region9
    $region8: #{tpu_custom_call.1} parent=1 // pred_region
      %s33 = ssub.s32 512, 512
      %34 = vsyncadd [#allocation7], %s33
      %s35 = sshll.u32 [#allocation6], 4
      %s36 = int_to_ptr.vmem [resolvable:$true] %s35
      %41 = dma.hbm_to_vmem [thread:$0]  %s1, 512, %s36, [#allocation7], 128, 128, 8
    $region9: #{tpu_custom_call.1} parent=1 // pred_fallthru
      _
    // Predicated region
    $region10: #{tpu_custom_call.1} parent=1 // pred_check
      _
    $region11: #{tpu_custom_call.1} parent=1 // pred_check_branch
      %43 = sbr.rel (0) target = $region13
    $region12: #{tpu_custom_call.1} parent=1 // pred_region
      %s45 = ssub.s32 32, 32
      %46 = vsyncadd [#allocation7], %s45
      %s48 = sshll.u32 [#allocation8], 4
      %s49 = int_to_ptr.vmem [resolvable:$true] %s48
      %51 = dma.hbm_to_vmem [thread:$0]  %s2, 32, %s49, [#allocation7]
    $region13: #{tpu_custom_call.1} parent=1 // pred_fallthru
      _
    // Predicated region
    $region14: #{tpu_custom_call.1} parent=1 // pred_check
      _
    $region15: #{tpu_custom_call.1} parent=1 // pred_check_branch
      %53 = sbr.rel (0) target = $region17
    $region16: #{tpu_custom_call.1} parent=1 // pred_region
      %s55 = ssub.s32 8192, 8192
      %56 = vsyncadd [#allocation10], %s55
      %s57 = sshll.u32 [#allocation9], 4
      %s58 = int_to_ptr.vmem [resolvable:$true] %s57
      %63 = dma.hbm_to_vmem [thread:$0]  %s3, 8192, %s58, [#allocation10], 256, 256, 16
    $region17: #{tpu_custom_call.1} parent=1 // pred_fallthru
      _
    // Predicated region
    $region18: #{tpu_custom_call.1} parent=1 // pred_check
      _
    $region19: #{tpu_custom_call.1} parent=1 // pred_check_branch
      %65 = sbr.rel (0) target = $region21
    $region20: #{tpu_custom_call.1} parent=1 // pred_region
      _
    $region21: #{tpu_custom_call.1} parent=1 // pred_fallthru
      _
    // Predicated region
    $region22: #{tpu_custom_call.1} parent=1 // pred_check
      _
    $region23: #{tpu_custom_call.1} parent=1 // pred_check_branch
      %67 = sbr.rel (0) target = $region25
    $region24: #{tpu_custom_call.1} parent=1 // pred_region
      %s69 = ssub.s32 32768, 32768
      %70 = vsyncadd [#allocation10], %s69
      %s71 = sshll.u32 [#allocation11], 4
      %s72 = int_to_ptr.vmem [resolvable:$true] %s71
      %77 = dma.hbm_to_vmem [thread:$0]  %s5, 32768, %s72, [#allocation10], 512, 512, 32
    $region25: #{tpu_custom_call.1} parent=1 // pred_fallthru
      _
    // Predicated region
    $region26: #{tpu_custom_call.1} parent=1 // pred_check
      _
    $region27: #{tpu_custom_call.1} parent=1 // pred_check_branch
      %79 = sbr.rel (0) target = $region29
    $region28: #{tpu_custom_call.1} parent=1 // pred_region
      _
    $region29: #{tpu_custom_call.1} parent=1 // pred_fallthru
      _
    // Predicated region
    $region30: #{tpu_custom_call.1} parent=1 // pred_check
      _
    $region31: #{tpu_custom_call.1} parent=1 // pred_check_branch
      %81 = sbr.rel (0) target = $region33
    $region32: #{tpu_custom_call.1} parent=1 // pred_region
      %s83 = ssub.s32 128, 128
      %84 = vsyncadd [#allocation13], %s83
      %s86 = sshll.u32 [#allocation12], 4
      %s87 = int_to_ptr.vmem [resolvable:$true] %s86
      %89 = dma.hbm_to_vmem [thread:$0]  %s7, 128, %s87, [#allocation13]
    $region33: #{tpu_custom_call.1} parent=1 // pred_fallthru
      _
    // Predicated region
    $region34: #{tpu_custom_call.1} parent=1 // pred_check
      _
    $region35: #{tpu_custom_call.1} parent=1 // pred_check_branch
      %91 = sbr.rel (0) target = $region37
    $region36: #{tpu_custom_call.1} parent=1 // pred_region
      _
    $region37: #{tpu_custom_call.1} parent=1 // pred_fallthru
      _
    // Predicated region
    $region38: #{tpu_custom_call.1} parent=1 // pred_check
      _
    $region39: #{tpu_custom_call.1} parent=1 // pred_check_branch
      %93 = sbr.rel (0) target = $region41
    $region40: #{tpu_custom_call.1} parent=1 // pred_region
      %94 = dma.done [#allocation4], 128
    $region41: #{tpu_custom_call.1} parent=1 // pred_fallthru
      _
    // Predicated region
    $region42: #{tpu_custom_call.1} parent=1 // pred_check
      _
    $region43: #{tpu_custom_call.1} parent=1 // pred_check_branch
      %96 = sbr.rel (0) target = $region45
    $region44: #{tpu_custom_call.1} parent=1 // pred_region
      %97 = dma.done [#allocation7], 512
    $region45: #{tpu_custom_call.1} parent=1 // pred_fallthru
      _
    // Predicated region
    $region46: #{tpu_custom_call.1} parent=1 // pred_check
      _
    $region47: #{tpu_custom_call.1} parent=1 // pred_check_branch
      %99 = sbr.rel (0) target = $region49
    $region48: #{tpu_custom_call.1} parent=1 // pred_region
      %100 = dma.done [#allocation7], 32
    $region49: #{tpu_custom_call.1} parent=1 // pred_fallthru
      _
    // Predicated region
    $region50: #{tpu_custom_call.1} parent=1 // pred_check
      _
    $region51: #{tpu_custom_call.1} parent=1 // pred_check_branch
      %102 = sbr.rel (0) target = $region53
    $region52: #{tpu_custom_call.1} parent=1 // pred_region
      %103 = dma.done [#allocation10], 8192
    $region53: #{tpu_custom_call.1} parent=1 // pred_fallthru
      _
    // Predicated region
    $region54: #{tpu_custom_call.1} parent=1 // pred_check
      _
    $region55: #{tpu_custom_call.1} parent=1 // pred_check_branch
      %105 = sbr.rel (0) target = $region57
    $region56: #{tpu_custom_call.1} parent=1 // pred_region
      %106 = dma.done [#allocation10], 32768
    $region57: #{tpu_custom_call.1} parent=1 // pred_fallthru
      _
    // Predicated region
    $region58: #{tpu_custom_call.1} parent=1 // pred_check
      _
    $region59: #{tpu_custom_call.1} parent=1 // pred_check_branch
      %108 = sbr.rel (0) target = $region61
    $region60: #{tpu_custom_call.1} parent=1 // pred_region
      %109 = dma.done [#allocation13], 128
    $region61: #{tpu_custom_call.1} parent=1 // pred_fallthru
      _
    %v111 = vld [vmem:[#allocation3] sm:$0xff]
    %v112 = vpack.c.bf16 %v111, %v111
    %v113 = vld [vmem:[#allocation6] sm:$0xff]
    %v114 = vld [vmem:[#allocation6 + $0x8] sm:$0xff]
    %v115 = vld [vmem:[#allocation6 + $0x10] sm:$0xff]
    %v116 = vld [vmem:[#allocation6 + $0x18] sm:$0xff]
    %v117 = vld [vmem:[#allocation8] sm:$0x3]
    %v119 = vlaneseq
    %v120 = vshrl.u32 %v119, 7
    %v121 = vsub.s32 0, %v120
    %v122 = vrot.slane %v117, %v121
    %v123 = vlaneseq
    %v124 = vshrl.u32 %v123, 7
    %v125 = vsub.s32 1, %v124
    %v126 = vrot.slane %v117, %v125
    %v133 = vunpack.c.l.b16 %v113
    %v134 = vunpack.c.h.b16 %v113
    %v135 = vunpack.c.l.b16 %v114
    %v136 = vunpack.c.h.b16 %v114
    %v137 = vunpack.c.l.b16 %v115
    %v138 = vunpack.c.h.b16 %v115
    %v139 = vunpack.c.l.b16 %v116
    %v140 = vunpack.c.h.b16 %v116
    %v141 = vpack.c.b16 %v135, %v133
    %v142 = vpack.c.b16 %v136, %v134
    %v143 = vpack.c.b16 %v139, %v137
    %v144 = vpack.c.b16 %v140, %v138
    %vm149 = vcmask 261120
    %v151 = vsel %vm149, %v112, 0
    %153 = vmatprep.subr.bf16.mxu0 0
    %154 = vmatpush1.bf16.msra.mxu0 0
    %155 = vmatprep.subr.bf16.mxu0 0
    %156 = vmatpush1.bf16.msra.mxu0 0
    %157 = vmatprep.subr.bf16.mxu0 0
    %158 = vmatpush1.bf16.msra.mxu0 0
    %159 = vmatprep.subr.bf16.mxu0 0
    %160 = vmatpush1.bf16.msra.mxu0 0
    %161 = vmatprep.subr.bf16.mxu0 0
    %162 = vmatpush1.bf16.msra.mxu0 0
    %163 = vmatprep.subr.bf16.mxu0 0
    %164 = vmatpush1.bf16.msra.mxu0 0
    %165 = vmatprep.subr.bf16.mxu0 %v144
    %166 = vmatpush1.bf16.msra.mxu0 %v143
    %167 = vmatprep.subr.bf16.mxu0 %v142
    %168 = vmatpush1.bf16.msra.mxu0 %v141
    %169 = vmatprep.subr.bf16.mxu0 0
    %170 = vmatpush2.bf16.msra.mxu0 0
    %171 = vmatprep.subr.bf16.mxu0 0
    %172 = vmatpush2.bf16.msra.mxu0 0
    %173 = vmatprep.subr.bf16.mxu0 0
    %174 = vmatpush2.bf16.msra.mxu0 0
    %175 = vmatprep.subr.bf16.mxu0 0
    %176 = vmatpush2.bf16.msra.mxu0 0
    %177 = vmatprep.subr.bf16.mxu0 0
    %178 = vmatpush2.bf16.msra.mxu0 0
    %179 = vmatprep.subr.bf16.mxu0 0
    %180 = vmatpush2.bf16.msra.mxu0 0
    %181 = vmatprep.subr.bf16.mxu0 0
    %182 = vmatpush2.bf16.msra.mxu0 0
    %183 = vmatprep.subr.bf16.mxu0 0
    %184 = vmatpush2.bf16.msra.mxu0 0
    %185 = vmatprep.mubr.bf16.mxu0 0
    %186 = vmatmul.mubr.bf16.gmra.mxu0 %v151
    %v187 = vpop.f32.mrf.mxu0
    %v188 = vadd.f32 %v122, %v187
    %v189 = vpop.f32.mrf.mxu0
    %v190 = vadd.f32 %v126, %v189
    %v191 = vpop.f32.mrf.mxu0
    %v192 = vpop.f32.mrf.mxu0
    %193 = vdwg.mxu0
    %v194 = vmul.f32 %v188, 0.01
    %v195 = vmul.f32 %v190, 0.01
    %v196 = vmax.f32 %v188, %v194
    %v197 = vmax.f32 %v190, %v195
    %v198 = vpack.c.bf16 %v196, %v196
    %v199 = vpack.c.bf16 %v197, %v197
    %v200 = vld [vmem:[#allocation9] sm:$0xff]
    %v201 = vld [vmem:[#allocation9 + $0x8] sm:$0xff]
    %v202 = vld [vmem:[#allocation9 + $0x10] sm:$0xff]
    %v203 = vld [vmem:[#allocation9 + $0x18] sm:$0xff]
    %v204 = vld [vmem:[#allocation9 + $0x20] sm:$0xff]
    %v205 = vld [vmem:[#allocation9 + $0x28] sm:$0xff]
    %v206 = vld [vmem:[#allocation9 + $0x30] sm:$0xff]
    %v207 = vld [vmem:[#allocation9 + $0x38] sm:$0xff]
    %v208 = vld [vmem:[#allocation9 + $0x40] sm:$0xff]
    %v209 = vld [vmem:[#allocation9 + $0x48] sm:$0xff]
    %v210 = vld [vmem:[#allocation9 + $0x50] sm:$0xff]
    %v211 = vld [vmem:[#allocation9 + $0x58] sm:$0xff]
    %v212 = vld [vmem:[#allocation9 + $0x60] sm:$0xff]
    %v213 = vld [vmem:[#allocation9 + $0x68] sm:$0xff]
    %v214 = vld [vmem:[#allocation9 + $0x70] sm:$0xff]
    %v215 = vld [vmem:[#allocation9 + $0x78] sm:$0xff]
    %v216 = vld [vmem:[#allocation9 + $0x80] sm:$0xff]
    %v217 = vld [vmem:[#allocation9 + $0x88] sm:$0xff]
    %v218 = vld [vmem:[#allocation9 + $0x90] sm:$0xff]
    %v219 = vld [vmem:[#allocation9 + $0x98] sm:$0xff]
    %v220 = vld [vmem:[#allocation9 + $0xa0] sm:$0xff]
    %v221 = vld [vmem:[#allocation9 + $0xa8] sm:$0xff]
    %v222 = vld [vmem:[#allocation9 + $0xb0] sm:$0xff]
    %v223 = vld [vmem:[#allocation9 + $0xb8] sm:$0xff]
    %v224 = vld [vmem:[#allocation9 + $0xc0] sm:$0xff]
    %v225 = vld [vmem:[#allocation9 + $0xc8] sm:$0xff]
    %v226 = vld [vmem:[#allocation9 + $0xd0] sm:$0xff]
    %v227 = vld [vmem:[#allocation9 + $0xd8] sm:$0xff]
    %v228 = vld [vmem:[#allocation9 + $0xe0] sm:$0xff]
    %v229 = vld [vmem:[#allocation9 + $0xe8] sm:$0xff]
    %v230 = vld [vmem:[#allocation9 + $0xf0] sm:$0xff]
    %v231 = vld [vmem:[#allocation9 + $0xf8] sm:$0xff]
    %v232 = vld [vmem:[#allocation9 + $0x100] sm:$0xff]
    %v233 = vld [vmem:[#allocation9 + $0x108] sm:$0xff]
    %v234 = vld [vmem:[#allocation9 + $0x110] sm:$0xff]
    %v235 = vld [vmem:[#allocation9 + $0x118] sm:$0xff]
    %v236 = vld [vmem:[#allocation9 + $0x120] sm:$0xff]
    %v237 = vld [vmem:[#allocation9 + $0x128] sm:$0xff]
    %v238 = vld [vmem:[#allocation9 + $0x130] sm:$0xff]
    %v239 = vld [vmem:[#allocation9 + $0x138] sm:$0xff]
    %v240 = vld [vmem:[#allocation9 + $0x140] sm:$0xff]
    %v241 = vld [vmem:[#allocation9 + $0x148] sm:$0xff]
    %v242 = vld [vmem:[#allocation9 + $0x150] sm:$0xff]
    %v243 = vld [vmem:[#allocation9 + $0x158] sm:$0xff]
    %v244 = vld [vmem:[#allocation9 + $0x160] sm:$0xff]
    %v245 = vld [vmem:[#allocation9 + $0x168] sm:$0xff]
    %v246 = vld [vmem:[#allocation9 + $0x170] sm:$0xff]
    %v247 = vld [vmem:[#allocation9 + $0x178] sm:$0xff]
    %v248 = vld [vmem:[#allocation9 + $0x180] sm:$0xff]
    %v249 = vld [vmem:[#allocation9 + $0x188] sm:$0xff]
    %v250 = vld [vmem:[#allocation9 + $0x190] sm:$0xff]
    %v251 = vld [vmem:[#allocation9 + $0x198] sm:$0xff]
    %v252 = vld [vmem:[#allocation9 + $0x1a0] sm:$0xff]
    %v253 = vld [vmem:[#allocation9 + $0x1a8] sm:$0xff]
    %v254 = vld [vmem:[#allocation9 + $0x1b0] sm:$0xff]
    %v255 = vld [vmem:[#allocation9 + $0x1b8] sm:$0xff]
    %v256 = vld [vmem:[#allocation9 + $0x1c0] sm:$0xff]
    %v257 = vld [vmem:[#allocation9 + $0x1c8] sm:$0xff]
    %v258 = vld [vmem:[#allocation9 + $0x1d0] sm:$0xff]
    %v259 = vld [vmem:[#allocation9 + $0x1d8] sm:$0xff]
    %v260 = vld [vmem:[#allocation9 + $0x1e0] sm:$0xff]
    %v261 = vld [vmem:[#allocation9 + $0x1e8] sm:$0xff]
    %v262 = vld [vmem:[#allocation9 + $0x1f0] sm:$0xff]
    %v263 = vld [vmem:[#allocation9 + $0x1f8] sm:$0xff]
    %v264 = vld [vmem:[%s4] sm:$0xf]
    %v266 = vlaneseq
    %v267 = vshrl.u32 %v266, 7
    %v268 = vsub.s32 0, %v267
    %v269 = vrot.slane %v264, %v268
    %v270 = vlaneseq
    %v271 = vshrl.u32 %v270, 7
    %v272 = vsub.s32 1, %v271
    %v273 = vrot.slane %v264, %v272
    %v274 = vlaneseq
    %v275 = vshrl.u32 %v274, 7
    %v276 = vsub.s32 2, %v275
    %v277 = vrot.slane %v264, %v276
    %v278 = vlaneseq
    %v279 = vshrl.u32 %v278, 7
    %v280 = vsub.s32 3, %v279
    %v281 = vrot.slane %v264, %v280
    %v350 = vunpack.c.l.b16 %v200
    %v351 = vunpack.c.h.b16 %v200
    %v352 = vunpack.c.l.b16 %v201
    %v353 = vunpack.c.h.b16 %v201
    %v354 = vunpack.c.l.b16 %v202
    %v355 = vunpack.c.h.b16 %v202
    %v356 = vunpack.c.l.b16 %v203
    %v357 = vunpack.c.h.b16 %v203
    %v358 = vunpack.c.l.b16 %v204
    %v359 = vunpack.c.h.b16 %v204
    %v360 = vunpack.c.l.b16 %v205
    %v361 = vunpack.c.h.b16 %v205
    %v362 = vunpack.c.l.b16 %v206
    %v363 = vunpack.c.h.b16 %v206
    %v364 = vunpack.c.l.b16 %v207
    %v365 = vunpack.c.h.b16 %v207
    %v366 = vunpack.c.l.b16 %v208
    %v367 = vunpack.c.h.b16 %v208
    %v368 = vunpack.c.l.b16 %v209
    %v369 = vunpack.c.h.b16 %v209
    %v370 = vunpack.c.l.b16 %v210
    %v371 = vunpack.c.h.b16 %v210
    %v372 = vunpack.c.l.b16 %v211
    %v373 = vunpack.c.h.b16 %v211
    %v374 = vunpack.c.l.b16 %v212
    %v375 = vunpack.c.h.b16 %v212
    %v376 = vunpack.c.l.b16 %v213
    %v377 = vunpack.c.h.b16 %v213
    %v378 = vunpack.c.l.b16 %v214
    %v379 = vunpack.c.h.b16 %v214
    %v380 = vunpack.c.l.b16 %v215
    %v381 = vunpack.c.h.b16 %v215
    %v382 = vunpack.c.l.b16 %v216
    %v383 = vunpack.c.h.b16 %v216
    %v384 = vunpack.c.l.b16 %v217
    %v385 = vunpack.c.h.b16 %v217
    %v386 = vunpack.c.l.b16 %v218
    %v387 = vunpack.c.h.b16 %v218
    %v388 = vunpack.c.l.b16 %v219
    %v389 = vunpack.c.h.b16 %v219
    %v390 = vunpack.c.l.b16 %v220
    %v391 = vunpack.c.h.b16 %v220
    %v392 = vunpack.c.l.b16 %v221
    %v393 = vunpack.c.h.b16 %v221
    %v394 = vunpack.c.l.b16 %v222
    %v395 = vunpack.c.h.b16 %v222
    %v396 = vunpack.c.l.b16 %v223
    %v397 = vunpack.c.h.b16 %v223
    %v398 = vunpack.c.l.b16 %v224
    %v399 = vunpack.c.h.b16 %v224
    %v400 = vunpack.c.l.b16 %v225
    %v401 = vunpack.c.h.b16 %v225
    %v402 = vunpack.c.l.b16 %v226
    %v403 = vunpack.c.h.b16 %v226
    %v404 = vunpack.c.l.b16 %v227
    %v405 = vunpack.c.h.b16 %v227
    %v406 = vunpack.c.l.b16 %v228
    %v407 = vunpack.c.h.b16 %v228
    %v408 = vunpack.c.l.b16 %v229
    %v409 = vunpack.c.h.b16 %v229
    %v410 = vunpack.c.l.b16 %v230
    %v411 = vunpack.c.h.b16 %v230
    %v412 = vunpack.c.l.b16 %v231
    %v413 = vunpack.c.h.b16 %v231
    %v414 = vunpack.c.l.b16 %v232
    %v415 = vunpack.c.h.b16 %v232
    %v416 = vunpack.c.l.b16 %v233
    %v417 = vunpack.c.h.b16 %v233
    %v418 = vunpack.c.l.b16 %v234
    %v419 = vunpack.c.h.b16 %v234
    %v420 = vunpack.c.l.b16 %v235
    %v421 = vunpack.c.h.b16 %v235
    %v422 = vunpack.c.l.b16 %v236
    %v423 = vunpack.c.h.b16 %v236
    %v424 = vunpack.c.l.b16 %v237
    %v425 = vunpack.c.h.b16 %v237
    %v426 = vunpack.c.l.b16 %v238
    %v427 = vunpack.c.h.b16 %v238
    %v428 = vunpack.c.l.b16 %v239
    %v429 = vunpack.c.h.b16 %v239
    %v430 = vunpack.c.l.b16 %v240
    %v431 = vunpack.c.h.b16 %v240
    %v432 = vunpack.c.l.b16 %v241
    %v433 = vunpack.c.h.b16 %v241
    %v434 = vunpack.c.l.b16 %v242
    %v435 = vunpack.c.h.b16 %v242
    %v436 = vunpack.c.l.b16 %v243
    %v437 = vunpack.c.h.b16 %v243
    %v438 = vunpack.c.l.b16 %v244
    %v439 = vunpack.c.h.b16 %v244
    %v440 = vunpack.c.l.b16 %v245
    %v441 = vunpack.c.h.b16 %v245
    %v442 = vunpack.c.l.b16 %v246
    %v443 = vunpack.c.h.b16 %v246
    %v444 = vunpack.c.l.b16 %v247
    %v445 = vunpack.c.h.b16 %v247
    %v446 = vunpack.c.l.b16 %v248
    %v447 = vunpack.c.h.b16 %v248
    %v448 = vunpack.c.l.b16 %v249
    %v449 = vunpack.c.h.b16 %v249
    %v450 = vunpack.c.l.b16 %v250
    %v451 = vunpack.c.h.b16 %v250
    %v452 = vunpack.c.l.b16 %v251
    %v453 = vunpack.c.h.b16 %v251
    %v454 = vunpack.c.l.b16 %v252
    %v455 = vunpack.c.h.b16 %v252
    %v456 = vunpack.c.l.b16 %v253
    %v457 = vunpack.c.h.b16 %v253
    %v458 = vunpack.c.l.b16 %v254
    %v459 = vunpack.c.h.b16 %v254
    %v460 = vunpack.c.l.b16 %v255
    %v461 = vunpack.c.h.b16 %v255
    %v462 = vunpack.c.l.b16 %v256
    %v463 = vunpack.c.h.b16 %v256
    %v464 = vunpack.c.l.b16 %v257
    %v465 = vunpack.c.h.b16 %v257
    %v466 = vunpack.c.l.b16 %v258
    %v467 = vunpack.c.h.b16 %v258
    %v468 = vunpack.c.l.b16 %v259
    %v469 = vunpack.c.h.b16 %v259
    %v470 = vunpack.c.l.b16 %v260
    %v471 = vunpack.c.h.b16 %v260
    %v472 = vunpack.c.l.b16 %v261
    %v473 = vunpack.c.h.b16 %v261
    %v474 = vunpack.c.l.b16 %v262
    %v475 = vunpack.c.h.b16 %v262
    %v476 = vunpack.c.l.b16 %v263
    %v477 = vunpack.c.h.b16 %v263
    %v478 = vpack.c.b16 %v354, %v350
    %v479 = vpack.c.b16 %v355, %v351
    %v480 = vpack.c.b16 %v356, %v352
    %v481 = vpack.c.b16 %v357, %v353
    %v482 = vpack.c.b16 %v362, %v358
    %v483 = vpack.c.b16 %v363, %v359
    %v484 = vpack.c.b16 %v364, %v360
    %v485 = vpack.c.b16 %v365, %v361
    %v486 = vpack.c.b16 %v370, %v366
    %v487 = vpack.c.b16 %v371, %v367
    %v488 = vpack.c.b16 %v372, %v368
    %v489 = vpack.c.b16 %v373, %v369
    %v490 = vpack.c.b16 %v378, %v374
    %v491 = vpack.c.b16 %v379, %v375
    %v492 = vpack.c.b16 %v380, %v376
    %v493 = vpack.c.b16 %v381, %v377
    %v494 = vpack.c.b16 %v386, %v382
    %v495 = vpack.c.b16 %v387, %v383
    %v496 = vpack.c.b16 %v388, %v384
    %v497 = vpack.c.b16 %v389, %v385
    %v498 = vpack.c.b16 %v394, %v390
    %v499 = vpack.c.b16 %v395, %v391
    %v500 = vpack.c.b16 %v396, %v392
    %v501 = vpack.c.b16 %v397, %v393
    %v502 = vpack.c.b16 %v402, %v398
    %v503 = vpack.c.b16 %v403, %v399
    %v504 = vpack.c.b16 %v404, %v400
    %v505 = vpack.c.b16 %v405, %v401
    %v506 = vpack.c.b16 %v410, %v406
    %v507 = vpack.c.b16 %v411, %v407
    %v508 = vpack.c.b16 %v412, %v408
    %v509 = vpack.c.b16 %v413, %v409
    %v510 = vpack.c.b16 %v418, %v414
    %v511 = vpack.c.b16 %v419, %v415
    %v512 = vpack.c.b16 %v420, %v416
    %v513 = vpack.c.b16 %v421, %v417
    %v514 = vpack.c.b16 %v426, %v422
    %v515 = vpack.c.b16 %v427, %v423
    %v516 = vpack.c.b16 %v428, %v424
    %v517 = vpack.c.b16 %v429, %v425
    %v518 = vpack.c.b16 %v434, %v430
    %v519 = vpack.c.b16 %v435, %v431
    %v520 = vpack.c.b16 %v436, %v432
    %v521 = vpack.c.b16 %v437, %v433
    %v522 = vpack.c.b16 %v442, %v438
    %v523 = vpack.c.b16 %v443, %v439
    %v524 = vpack.c.b16 %v444, %v440
    %v525 = vpack.c.b16 %v445, %v441
    %v526 = vpack.c.b16 %v450, %v446
    %v527 = vpack.c.b16 %v451, %v447
    %v528 = vpack.c.b16 %v452, %v448
    %v529 = vpack.c.b16 %v453, %v449
    %v530 = vpack.c.b16 %v458, %v454
    %v531 = vpack.c.b16 %v459, %v455
    %v532 = vpack.c.b16 %v460, %v456
    %v533 = vpack.c.b16 %v461, %v457
    %v534 = vpack.c.b16 %v466, %v462
    %v535 = vpack.c.b16 %v467, %v463
    %v536 = vpack.c.b16 %v468, %v464
    %v537 = vpack.c.b16 %v469, %v465
    %v538 = vpack.c.b16 %v474, %v470
    %v539 = vpack.c.b16 %v475, %v471
    %v540 = vpack.c.b16 %v476, %v472
    %v541 = vpack.c.b16 %v477, %v473
    %606 = vmatprep.subr.bf16.mxu0 %v507
    %607 = vmatpush1.bf16.msra.mxu0 %v506
    %608 = vmatprep.subr.bf16.mxu0 %v503
    %609 = vmatpush1.bf16.msra.mxu0 %v502
    %610 = vmatprep.subr.bf16.mxu0 %v499
    %611 = vmatpush1.bf16.msra.mxu0 %v498
    %612 = vmatprep.subr.bf16.mxu0 %v495
    %613 = vmatpush1.bf16.msra.mxu0 %v494
    %614 = vmatprep.subr.bf16.mxu0 %v491
    %615 = vmatpush1.bf16.msra.mxu0 %v490
    %616 = vmatprep.subr.bf16.mxu0 %v487
    %617 = vmatpush1.bf16.msra.mxu0 %v486
    %618 = vmatprep.subr.bf16.mxu0 %v483
    %619 = vmatpush1.bf16.msra.mxu0 %v482
    %620 = vmatprep.subr.bf16.mxu0 %v479
    %621 = vmatpush1.bf16.msra.mxu0 %v478
    %622 = vmatprep.subr.bf16.mxu0 %v539
    %623 = vmatpush2.bf16.msra.mxu0 %v538
    %624 = vmatprep.subr.bf16.mxu0 %v535
    %625 = vmatpush2.bf16.msra.mxu0 %v534
    %626 = vmatprep.subr.bf16.mxu0 %v531
    %627 = vmatpush2.bf16.msra.mxu0 %v530
    %628 = vmatprep.subr.bf16.mxu0 %v527
    %629 = vmatpush2.bf16.msra.mxu0 %v526
    %630 = vmatprep.subr.bf16.mxu0 %v523
    %631 = vmatpush2.bf16.msra.mxu0 %v522
    %632 = vmatprep.subr.bf16.mxu0 %v519
    %633 = vmatpush2.bf16.msra.mxu0 %v518
    %634 = vmatprep.subr.bf16.mxu0 %v515
    %635 = vmatpush2.bf16.msra.mxu0 %v514
    %636 = vmatprep.subr.bf16.mxu0 %v511
    %637 = vmatpush2.bf16.msra.mxu0 %v510
    %638 = vmatprep.mubr.bf16.mxu0 %v199
    %639 = vmatmul.mubr.bf16.gmra.mxu0 %v198
    %v640 = vpop.f32.mrf.mxu0
    %v641 = vadd.f32 %v269, %v640
    %v642 = vpop.f32.mrf.mxu0
    %v643 = vadd.f32 %v273, %v642
    %v644 = vpop.f32.mrf.mxu0
    %v645 = vpop.f32.mrf.mxu0
    %646 = vdwg.mxu0
    %647 = vmatprep.subr.bf16.mxu0 %v509
    %648 = vmatpush1.bf16.msra.mxu0 %v508
    %649 = vmatprep.subr.bf16.mxu0 %v505
    %650 = vmatpush1.bf16.msra.mxu0 %v504
    %651 = vmatprep.subr.bf16.mxu0 %v501
    %652 = vmatpush1.bf16.msra.mxu0 %v500
    %653 = vmatprep.subr.bf16.mxu0 %v497
    %654 = vmatpush1.bf16.msra.mxu0 %v496
    %655 = vmatprep.subr.bf16.mxu0 %v493
    %656 = vmatpush1.bf16.msra.mxu0 %v492
    %657 = vmatprep.subr.bf16.mxu0 %v489
    %658 = vmatpush1.bf16.msra.mxu0 %v488
    %659 = vmatprep.subr.bf16.mxu0 %v485
    %660 = vmatpush1.bf16.msra.mxu0 %v484
    %661 = vmatprep.subr.bf16.mxu0 %v481
    %662 = vmatpush1.bf16.msra.mxu0 %v480
    %663 = vmatprep.subr.bf16.mxu0 %v541
    %664 = vmatpush2.bf16.msra.mxu0 %v540
    %665 = vmatprep.subr.bf16.mxu0 %v537
    %666 = vmatpush2.bf16.msra.mxu0 %v536
    %667 = vmatprep.subr.bf16.mxu0 %v533
    %668 = vmatpush2.bf16.msra.mxu0 %v532
    %669 = vmatprep.subr.bf16.mxu0 %v529
    %670 = vmatpush2.bf16.msra.mxu0 %v528
    %671 = vmatprep.subr.bf16.mxu0 %v525
    %672 = vmatpush2.bf16.msra.mxu0 %v524
    %673 = vmatprep.subr.bf16.mxu0 %v521
    %674 = vmatpush2.bf16.msra.mxu0 %v520
    %675 = vmatprep.subr.bf16.mxu0 %v517
    %676 = vmatpush2.bf16.msra.mxu0 %v516
    %677 = vmatprep.subr.bf16.mxu0 %v513
    %678 = vmatpush2.bf16.msra.mxu0 %v512
    %679 = vmatprep.mubr.bf16.mxu0 %v199
    %680 = vmatmul.mubr.bf16.gmra.mxu0 %v198
    %v681 = vpop.f32.mrf.mxu0
    %v682 = vadd.f32 %v277, %v681
    %v683 = vpop.f32.mrf.mxu0
    %v684 = vadd.f32 %v281, %v683
    %v685 = vpop.f32.mrf.mxu0
    %v686 = vpop.f32.mrf.mxu0
    %687 = vdwg.mxu0
    %v688 = vmul.f32 %v641, 0.01
    %v689 = vmul.f32 %v643, 0.01
    %v690 = vmul.f32 %v682, 0.01
    %v691 = vmul.f32 %v684, 0.01
    %v692 = vmax.f32 %v641, %v688
    %v693 = vmax.f32 %v643, %v689
    %v694 = vmax.f32 %v682, %v690
    %v695 = vmax.f32 %v684, %v691
    %v696 = vpack.c.bf16 %v692, %v692
    %v697 = vpack.c.bf16 %v693, %v693
    %v698 = vpack.c.bf16 %v694, %v694
    %v699 = vpack.c.bf16 %v695, %v695
    %v700 = vld [vmem:[#allocation11] sm:$0xff]
    %v701 = vld [vmem:[#allocation11 + $0x8] sm:$0xff]
    %v702 = vld [vmem:[#allocation11 + $0x10] sm:$0xff]
    %v703 = vld [vmem:[#allocation11 + $0x18] sm:$0xff]
    %v704 = vld [vmem:[#allocation11 + $0x20] sm:$0xff]
    %v705 = vld [vmem:[#allocation11 + $0x28] sm:$0xff]
    %v706 = vld [vmem:[#allocation11 + $0x30] sm:$0xff]
    %v707 = vld [vmem:[#allocation11 + $0x38] sm:$0xff]
    %v708 = vld [vmem:[#allocation11 + $0x40] sm:$0xff]
    %v709 = vld [vmem:[#allocation11 + $0x48] sm:$0xff]
    %v710 = vld [vmem:[#allocation11 + $0x50] sm:$0xff]
    %v711 = vld [vmem:[#allocation11 + $0x58] sm:$0xff]
    %v712 = vld [vmem:[#allocation11 + $0x60] sm:$0xff]
    %v713 = vld [vmem:[#allocation11 + $0x68] sm:$0xff]
    %v714 = vld [vmem:[#allocation11 + $0x70] sm:$0xff]
    %v715 = vld [vmem:[#allocation11 + $0x78] sm:$0xff]
    %v716 = vld [vmem:[#allocation11 + $0x80] sm:$0xff]
    %v717 = vld [vmem:[#allocation11 + $0x88] sm:$0xff]
    %v718 = vld [vmem:[#allocation11 + $0x90] sm:$0xff]
    %v719 = vld [vmem:[#allocation11 + $0x98] sm:$0xff]
    %v720 = vld [vmem:[#allocation11 + $0xa0] sm:$0xff]
    %v721 = vld [vmem:[#allocation11 + $0xa8] sm:$0xff]
    %v722 = vld [vmem:[#allocation11 + $0xb0] sm:$0xff]
    %v723 = vld [vmem:[#allocation11 + $0xb8] sm:$0xff]
    %v724 = vld [vmem:[#allocation11 + $0xc0] sm:$0xff]
    %v725 = vld [vmem:[#allocation11 + $0xc8] sm:$0xff]
    %v726 = vld [vmem:[#allocation11 + $0xd0] sm:$0xff]
    %v727 = vld [vmem:[#allocation11 + $0xd8] sm:$0xff]
    %v728 = vld [vmem:[#allocation11 + $0xe0] sm:$0xff]
    %v729 = vld [vmem:[#allocation11 + $0xe8] sm:$0xff]
    %v730 = vld [vmem:[#allocation11 + $0xf0] sm:$0xff]
    %v731 = vld [vmem:[#allocation11 + $0xf8] sm:$0xff]
    %v732 = vld [vmem:[#allocation11 + $0x100] sm:$0xff]
    %v733 = vld [vmem:[#allocation11 + $0x108] sm:$0xff]
    %v734 = vld [vmem:[#allocation11 + $0x110] sm:$0xff]
    %v735 = vld [vmem:[#allocation11 + $0x118] sm:$0xff]
    %v736 = vld [vmem:[#allocation11 + $0x120] sm:$0xff]
    %v737 = vld [vmem:[#allocation11 + $0x128] sm:$0xff]
    %v738 = vld [vmem:[#allocation11 + $0x130] sm:$0xff]
    %v739 = vld [vmem:[#allocation11 + $0x138] sm:$0xff]
    %v740 = vld [vmem:[#allocation11 + $0x140] sm:$0xff]
    %v741 = vld [vmem:[#allocation11 + $0x148] sm:$0xff]
    %v742 = vld [vmem:[#allocation11 + $0x150] sm:$0xff]
    %v743 = vld [vmem:[#allocation11 + $0x158] sm:$0xff]
    %v744 = vld [vmem:[#allocation11 + $0x160] sm:$0xff]
    %v745 = vld [vmem:[#allocation11 + $0x168] sm:$0xff]
    %v746 = vld [vmem:[#allocation11 + $0x170] sm:$0xff]
    %v747 = vld [vmem:[#allocation11 + $0x178] sm:$0xff]
    %v748 = vld [vmem:[#allocation11 + $0x180] sm:$0xff]
    %v749 = vld [vmem:[#allocation11 + $0x188] sm:$0xff]
    %v750 = vld [vmem:[#allocation11 + $0x190] sm:$0xff]
    %v751 = vld [vmem:[#allocation11 + $0x198] sm:$0xff]
    %v752 = vld [vmem:[#allocation11 + $0x1a0] sm:$0xff]
    %v753 = vld [vmem:[#allocation11 + $0x1a8] sm:$0xff]
    %v754 = vld [vmem:[#allocation11 + $0x1b0] sm:$0xff]
    %v755 = vld [vmem:[#allocation11 + $0x1b8] sm:$0xff]
    %v756 = vld [vmem:[#allocation11 + $0x1c0] sm:$0xff]
    %v757 = vld [vmem:[#allocation11 + $0x1c8] sm:$0xff]
    %v758 = vld [vmem:[#allocation11 + $0x1d0] sm:$0xff]
    %v759 = vld [vmem:[#allocation11 + $0x1d8] sm:$0xff]
    %v760 = vld [vmem:[#allocation11 + $0x1e0] sm:$0xff]
    %v761 = vld [vmem:[#allocation11 + $0x1e8] sm:$0xff]
    %v762 = vld [vmem:[#allocation11 + $0x1f0] sm:$0xff]
    %v763 = vld [vmem:[#allocation11 + $0x1f8] sm:$0xff]
    %v764 = vld [vmem:[#allocation11 + $0x200] sm:$0xff]
    %v765 = vld [vmem:[#allocation11 + $0x208] sm:$0xff]
    %v766 = vld [vmem:[#allocation11 + $0x210] sm:$0xff]
    %v767 = vld [vmem:[#allocation11 + $0x218] sm:$0xff]
    %v768 = vld [vmem:[#allocation11 + $0x220] sm:$0xff]
    %v769 = vld [vmem:[#allocation11 + $0x228] sm:$0xff]
    %v770 = vld [vmem:[#allocation11 + $0x230] sm:$0xff]
    %v771 = vld [vmem:[#allocation11 + $0x238] sm:$0xff]
    %v772 = vld [vmem:[#allocation11 + $0x240] sm:$0xff]
    %v773 = vld [vmem:[#allocation11 + $0x248] sm:$0xff]
    %v774 = vld [vmem:[#allocation11 + $0x250] sm:$0xff]
    %v775 = vld [vmem:[#allocation11 + $0x258] sm:$0xff]
    %v776 = vld [vmem:[#allocation11 + $0x260] sm:$0xff]
    %v777 = vld [vmem:[#allocation11 + $0x268] sm:$0xff]
    %v778 = vld [vmem:[#allocation11 + $0x270] sm:$0xff]
    %v779 = vld [vmem:[#allocation11 + $0x278] sm:$0xff]
    %v780 = vld [vmem:[#allocation11 + $0x280] sm:$0xff]
    %v781 = vld [vmem:[#allocation11 + $0x288] sm:$0xff]
    %v782 = vld [vmem:[#allocation11 + $0x290] sm:$0xff]
    %v783 = vld [vmem:[#allocation11 + $0x298] sm:$0xff]
    %v784 = vld [vmem:[#allocation11 + $0x2a0] sm:$0xff]
    %v785 = vld [vmem:[#allocation11 + $0x2a8] sm:$0xff]
    %v786 = vld [vmem:[#allocation11 + $0x2b0] sm:$0xff]
    %v787 = vld [vmem:[#allocation11 + $0x2b8] sm:$0xff]
    %v788 = vld [vmem:[#allocation11 + $0x2c0] sm:$0xff]
    %v789 = vld [vmem:[#allocation11 + $0x2c8] sm:$0xff]
    %v790 = vld [vmem:[#allocation11 + $0x2d0] sm:$0xff]
    %v791 = vld [vmem:[#allocation11 + $0x2d8] sm:$0xff]
    %v792 = vld [vmem:[#allocation11 + $0x2e0] sm:$0xff]
    %v793 = vld [vmem:[#allocation11 + $0x2e8] sm:$0xff]
    %v794 = vld [vmem:[#allocation11 + $0x2f0] sm:$0xff]
    %v795 = vld [vmem:[#allocation11 + $0x2f8] sm:$0xff]
    %v796 = vld [vmem:[#allocation11 + $0x300] sm:$0xff]
    %v797 = vld [vmem:[#allocation11 + $0x308] sm:$0xff]
    %v798 = vld [vmem:[#allocation11 + $0x310] sm:$0xff]
    %v799 = vld [vmem:[#allocation11 + $0x318] sm:$0xff]
    %v800 = vld [vmem:[#allocation11 + $0x320] sm:$0xff]
    %v801 = vld [vmem:[#allocation11 + $0x328] sm:$0xff]
    %v802 = vld [vmem:[#allocation11 + $0x330] sm:$0xff]
    %v803 = vld [vmem:[#allocation11 + $0x338] sm:$0xff]
    %v804 = vld [vmem:[#allocation11 + $0x340] sm:$0xff]
    %v805 = vld [vmem:[#allocation11 + $0x348] sm:$0xff]
    %v806 = vld [vmem:[#allocation11 + $0x350] sm:$0xff]
    %v807 = vld [vmem:[#allocation11 + $0x358] sm:$0xff]
    %v808 = vld [vmem:[#allocation11 + $0x360] sm:$0xff]
    %v809 = vld [vmem:[#allocation11 + $0x368] sm:$0xff]
    %v810 = vld [vmem:[#allocation11 + $0x370] sm:$0xff]
    %v811 = vld [vmem:[#allocation11 + $0x378] sm:$0xff]
    %v812 = vld [vmem:[#allocation11 + $0x380] sm:$0xff]
    %v813 = vld [vmem:[#allocation11 + $0x388] sm:$0xff]
    %v814 = vld [vmem:[#allocation11 + $0x390] sm:$0xff]
    %v815 = vld [vmem:[#allocation11 + $0x398] sm:$0xff]
    %v816 = vld [vmem:[#allocation11 + $0x3a0] sm:$0xff]
    %v817 = vld [vmem:[#allocation11 + $0x3a8] sm:$0xff]
    %v818 = vld [vmem:[#allocation11 + $0x3b0] sm:$0xff]
    %v819 = vld [vmem:[#allocation11 + $0x3b8] sm:$0xff]
    %v820 = vld [vmem:[#allocation11 + $0x3c0] sm:$0xff]
    %v821 = vld [vmem:[#allocation11 + $0x3c8] sm:$0xff]
    %v822 = vld [vmem:[#allocation11 + $0x3d0] sm:$0xff]
    %v823 = vld [vmem:[#allocation11 + $0x3d8] sm:$0xff]
    %v824 = vld [vmem:[#allocation11 + $0x3e0] sm:$0xff]
    %v825 = vld [vmem:[#allocation11 + $0x3e8] sm:$0xff]
    %v826 = vld [vmem:[#allocation11 + $0x3f0] sm:$0xff]
    %v827 = vld [vmem:[#allocation11 + $0x3f8] sm:$0xff]
    %v828 = vld [vmem:[#allocation11 + $0x400] sm:$0xff]
    %v829 = vld [vmem:[#allocation11 + $0x408] sm:$0xff]
    %v830 = vld [vmem:[#allocation11 + $0x410] sm:$0xff]
    %v831 = vld [vmem:[#allocation11 + $0x418] sm:$0xff]
    %v832 = vld [vmem:[#allocation11 + $0x420] sm:$0xff]
    %v833 = vld [vmem:[#allocation11 + $0x428] sm:$0xff]
    %v834 = vld [vmem:[#allocation11 + $0x430] sm:$0xff]
    %v835 = vld [vmem:[#allocation11 + $0x438] sm:$0xff]
    %v836 = vld [vmem:[#allocation11 + $0x440] sm:$0xff]
    %v837 = vld [vmem:[#allocation11 + $0x448] sm:$0xff]
    %v838 = vld [vmem:[#allocation11 + $0x450] sm:$0xff]
    %v839 = vld [vmem:[#allocation11 + $0x458] sm:$0xff]
    %v840 = vld [vmem:[#allocation11 + $0x460] sm:$0xff]
    %v841 = vld [vmem:[#allocation11 + $0x468] sm:$0xff]
    %v842 = vld [vmem:[#allocation11 + $0x470] sm:$0xff]
    %v843 = vld [vmem:[#allocation11 + $0x478] sm:$0xff]
    %v844 = vld [vmem:[#allocation11 + $0x480] sm:$0xff]
    %v845 = vld [vmem:[#allocation11 + $0x488] sm:$0xff]
    %v846 = vld [vmem:[#allocation11 + $0x490] sm:$0xff]
    %v847 = vld [vmem:[#allocation11 + $0x498] sm:$0xff]
    %v848 = vld [vmem:[#allocation11 + $0x4a0] sm:$0xff]
    %v849 = vld [vmem:[#allocation11 + $0x4a8] sm:$0xff]
    %v850 = vld [vmem:[#allocation11 + $0x4b0] sm:$0xff]
    %v851 = vld [vmem:[#allocation11 + $0x4b8] sm:$0xff]
    %v852 = vld [vmem:[#allocation11 + $0x4c0] sm:$0xff]
    %v853 = vld [vmem:[#allocation11 + $0x4c8] sm:$0xff]
    %v854 = vld [vmem:[#allocation11 + $0x4d0] sm:$0xff]
    %v855 = vld [vmem:[#allocation11 + $0x4d8] sm:$0xff]
    %v856 = vld [vmem:[#allocation11 + $0x4e0] sm:$0xff]
    %v857 = vld [vmem:[#allocation11 + $0x4e8] sm:$0xff]
    %v858 = vld [vmem:[#allocation11 + $0x4f0] sm:$0xff]
    %v859 = vld [vmem:[#allocation11 + $0x4f8] sm:$0xff]
    %v860 = vld [vmem:[#allocation11 + $0x500] sm:$0xff]
    %v861 = vld [vmem:[#allocation11 + $0x508] sm:$0xff]
    %v862 = vld [vmem:[#allocation11 + $0x510] sm:$0xff]
    %v863 = vld [vmem:[#allocation11 + $0x518] sm:$0xff]
    %v864 = vld [vmem:[#allocation11 + $0x520] sm:$0xff]
    %v865 = vld [vmem:[#allocation11 + $0x528] sm:$0xff]
    %v866 = vld [vmem:[#allocation11 + $0x530] sm:$0xff]
    %v867 = vld [vmem:[#allocation11 + $0x538] sm:$0xff]
    %v868 = vld [vmem:[#allocation11 + $0x540] sm:$0xff]
    %v869 = vld [vmem:[#allocation11 + $0x548] sm:$0xff]
    %v870 = vld [vmem:[#allocation11 + $0x550] sm:$0xff]
    %v871 = vld [vmem:[#allocation11 + $0x558] sm:$0xff]
    %v872 = vld [vmem:[#allocation11 + $0x560] sm:$0xff]
    %v873 = vld [vmem:[#allocation11 + $0x568] sm:$0xff]
    %v874 = vld [vmem:[#allocation11 + $0x570] sm:$0xff]
    %v875 = vld [vmem:[#allocation11 + $0x578] sm:$0xff]
    %v876 = vld [vmem:[#allocation11 + $0x580] sm:$0xff]
    %v877 = vld [vmem:[#allocation11 + $0x588] sm:$0xff]
    %v878 = vld [vmem:[#allocation11 + $0x590] sm:$0xff]
    %v879 = vld [vmem:[#allocation11 + $0x598] sm:$0xff]
    %v880 = vld [vmem:[#allocation11 + $0x5a0] sm:$0xff]
    %v881 = vld [vmem:[#allocation11 + $0x5a8] sm:$0xff]
    %v882 = vld [vmem:[#allocation11 + $0x5b0] sm:$0xff]
    %v883 = vld [vmem:[#allocation11 + $0x5b8] sm:$0xff]
    %v884 = vld [vmem:[#allocation11 + $0x5c0] sm:$0xff]
    %v885 = vld [vmem:[#allocation11 + $0x5c8] sm:$0xff]
    %v886 = vld [vmem:[#allocation11 + $0x5d0] sm:$0xff]
    %v887 = vld [vmem:[#allocation11 + $0x5d8] sm:$0xff]
    %v888 = vld [vmem:[#allocation11 + $0x5e0] sm:$0xff]
    %v889 = vld [vmem:[#allocation11 + $0x5e8] sm:$0xff]
    %v890 = vld [vmem:[#allocation11 + $0x5f0] sm:$0xff]
    %v891 = vld [vmem:[#allocation11 + $0x5f8] sm:$0xff]
    %v892 = vld [vmem:[#allocation11 + $0x600] sm:$0xff]
    %v893 = vld [vmem:[#allocation11 + $0x608] sm:$0xff]
    %v894 = vld [vmem:[#allocation11 + $0x610] sm:$0xff]
    %v895 = vld [vmem:[#allocation11 + $0x618] sm:$0xff]
    %v896 = vld [vmem:[#allocation11 + $0x620] sm:$0xff]
    %v897 = vld [vmem:[#allocation11 + $0x628] sm:$0xff]
    %v898 = vld [vmem:[#allocation11 + $0x630] sm:$0xff]
    %v899 = vld [vmem:[#allocation11 + $0x638] sm:$0xff]
    %v900 = vld [vmem:[#allocation11 + $0x640] sm:$0xff]
    %v901 = vld [vmem:[#allocation11 + $0x648] sm:$0xff]
    %v902 = vld [vmem:[#allocation11 + $0x650] sm:$0xff]
    %v903 = vld [vmem:[#allocation11 + $0x658] sm:$0xff]
    %v904 = vld [vmem:[#allocation11 + $0x660] sm:$0xff]
    %v905 = vld [vmem:[#allocation11 + $0x668] sm:$0xff]
    %v906 = vld [vmem:[#allocation11 + $0x670] sm:$0xff]
    %v907 = vld [vmem:[#allocation11 + $0x678] sm:$0xff]
    %v908 = vld [vmem:[#allocation11 + $0x680] sm:$0xff]
    %v909 = vld [vmem:[#allocation11 + $0x688] sm:$0xff]
    %v910 = vld [vmem:[#allocation11 + $0x690] sm:$0xff]
    %v911 = vld [vmem:[#allocation11 + $0x698] sm:$0xff]
    %v912 = vld [vmem:[#allocation11 + $0x6a0] sm:$0xff]
    %v913 = vld [vmem:[#allocation11 + $0x6a8] sm:$0xff]
    %v914 = vld [vmem:[#allocation11 + $0x6b0] sm:$0xff]
    %v915 = vld [vmem:[#allocation11 + $0x6b8] sm:$0xff]
    %v916 = vld [vmem:[#allocation11 + $0x6c0] sm:$0xff]
    %v917 = vld [vmem:[#allocation11 + $0x6c8] sm:$0xff]
    %v918 = vld [vmem:[#allocation11 + $0x6d0] sm:$0xff]
    %v919 = vld [vmem:[#allocation11 + $0x6d8] sm:$0xff]
    %v920 = vld [vmem:[#allocation11 + $0x6e0] sm:$0xff]
    %v921 = vld [vmem:[#allocation11 + $0x6e8] sm:$0xff]
    %v922 = vld [vmem:[#allocation11 + $0x6f0] sm:$0xff]
    %v923 = vld [vmem:[#allocation11 + $0x6f8] sm:$0xff]
    %v924 = vld [vmem:[#allocation11 + $0x700] sm:$0xff]
    %v925 = vld [vmem:[#allocation11 + $0x708] sm:$0xff]
    %v926 = vld [vmem:[#allocation11 + $0x710] sm:$0xff]
    %v927 = vld [vmem:[#allocation11 + $0x718] sm:$0xff]
    %v928 = vld [vmem:[#allocation11 + $0x720] sm:$0xff]
    %v929 = vld [vmem:[#allocation11 + $0x728] sm:$0xff]
    %v930 = vld [vmem:[#allocation11 + $0x730] sm:$0xff]
    %v931 = vld [vmem:[#allocation11 + $0x738] sm:$0xff]
    %v932 = vld [vmem:[#allocation11 + $0x740] sm:$0xff]
    %v933 = vld [vmem:[#allocation11 + $0x748] sm:$0xff]
    %v934 = vld [vmem:[#allocation11 + $0x750] sm:$0xff]
    %v935 = vld [vmem:[#allocation11 + $0x758] sm:$0xff]
    %v936 = vld [vmem:[#allocation11 + $0x760] sm:$0xff]
    %v937 = vld [vmem:[#allocation11 + $0x768] sm:$0xff]
    %v938 = vld [vmem:[#allocation11 + $0x770] sm:$0xff]
    %v939 = vld [vmem:[#allocation11 + $0x778] sm:$0xff]
    %v940 = vld [vmem:[#allocation11 + $0x780] sm:$0xff]
    %v941 = vld [vmem:[#allocation11 + $0x788] sm:$0xff]
    %v942 = vld [vmem:[#allocation11 + $0x790] sm:$0xff]
    %v943 = vld [vmem:[#allocation11 + $0x798] sm:$0xff]
    %v944 = vld [vmem:[#allocation11 + $0x7a0] sm:$0xff]
    %v945 = vld [vmem:[#allocation11 + $0x7a8] sm:$0xff]
    %v946 = vld [vmem:[#allocation11 + $0x7b0] sm:$0xff]
    %v947 = vld [vmem:[#allocation11 + $0x7b8] sm:$0xff]
    %v948 = vld [vmem:[#allocation11 + $0x7c0] sm:$0xff]
    %v949 = vld [vmem:[#allocation11 + $0x7c8] sm:$0xff]
    %v950 = vld [vmem:[#allocation11 + $0x7d0] sm:$0xff]
    %v951 = vld [vmem:[#allocation11 + $0x7d8] sm:$0xff]
    %v952 = vld [vmem:[#allocation11 + $0x7e0] sm:$0xff]
    %v953 = vld [vmem:[#allocation11 + $0x7e8] sm:$0xff]
    %v954 = vld [vmem:[#allocation11 + $0x7f0] sm:$0xff]
    %v955 = vld [vmem:[#allocation11 + $0x7f8] sm:$0xff]
    %v956 = vld [vmem:[%s6] sm:$0xff]
    %v958 = vlaneseq
    %v959 = vshrl.u32 %v958, 7
    %v960 = vsub.s32 0, %v959
    %v961 = vrot.slane %v956, %v960
    %v962 = vlaneseq
    %v963 = vshrl.u32 %v962, 7
    %v964 = vsub.s32 1, %v963
    %v965 = vrot.slane %v956, %v964
    %v966 = vlaneseq
    %v967 = vshrl.u32 %v966, 7
    %v968 = vsub.s32 2, %v967
    %v969 = vrot.slane %v956, %v968
    %v970 = vlaneseq
    %v971 = vshrl.u32 %v970, 7
    %v972 = vsub.s32 3, %v971
    %v973 = vrot.slane %v956, %v972
    %v974 = vlaneseq
    %v975 = vshrl.u32 %v974, 7
    %v976 = vsub.s32 4, %v975
    %v977 = vrot.slane %v956, %v976
    %v978 = vlaneseq
    %v979 = vshrl.u32 %v978, 7
    %v980 = vsub.s32 5, %v979
    %v981 = vrot.slane %v956, %v980
    %v982 = vlaneseq
    %v983 = vshrl.u32 %v982, 7
    %v984 = vsub.s32 6, %v983
    %v985 = vrot.slane %v956, %v984
    %v986 = vlaneseq
    %v987 = vshrl.u32 %v986, 7
    %v988 = vsub.s32 7, %v987
    %v989 = vrot.slane %v956, %v988
    %v1254 = vunpack.c.l.b16 %v700
    %v1255 = vunpack.c.h.b16 %v700
    %v1256 = vunpack.c.l.b16 %v701
    %v1257 = vunpack.c.h.b16 %v701
    %v1258 = vunpack.c.l.b16 %v702
    %v1259 = vunpack.c.h.b16 %v702
    %v1260 = vunpack.c.l.b16 %v703
    %v1261 = vunpack.c.h.b16 %v703
    %v1262 = vunpack.c.l.b16 %v704
    %v1263 = vunpack.c.h.b16 %v704
    %v1264 = vunpack.c.l.b16 %v705
    %v1265 = vunpack.c.h.b16 %v705
    %v1266 = vunpack.c.l.b16 %v706
    %v1267 = vunpack.c.h.b16 %v706
    %v1268 = vunpack.c.l.b16 %v707
    %v1269 = vunpack.c.h.b16 %v707
    %v1270 = vunpack.c.l.b16 %v708
    %v1271 = vunpack.c.h.b16 %v708
    %v1272 = vunpack.c.l.b16 %v709
    %v1273 = vunpack.c.h.b16 %v709
    %v1274 = vunpack.c.l.b16 %v710
    %v1275 = vunpack.c.h.b16 %v710
    %v1276 = vunpack.c.l.b16 %v711
    %v1277 = vunpack.c.h.b16 %v711
    %v1278 = vunpack.c.l.b16 %v712
    %v1279 = vunpack.c.h.b16 %v712
    %v1280 = vunpack.c.l.b16 %v713
    %v1281 = vunpack.c.h.b16 %v713
    %v1282 = vunpack.c.l.b16 %v714
    %v1283 = vunpack.c.h.b16 %v714
    %v1284 = vunpack.c.l.b16 %v715
    %v1285 = vunpack.c.h.b16 %v715
    %v1286 = vunpack.c.l.b16 %v716
    %v1287 = vunpack.c.h.b16 %v716
    %v1288 = vunpack.c.l.b16 %v717
    %v1289 = vunpack.c.h.b16 %v717
    %v1290 = vunpack.c.l.b16 %v718
    %v1291 = vunpack.c.h.b16 %v718
    %v1292 = vunpack.c.l.b16 %v719
    %v1293 = vunpack.c.h.b16 %v719
    %v1294 = vunpack.c.l.b16 %v720
    %v1295 = vunpack.c.h.b16 %v720
    %v1296 = vunpack.c.l.b16 %v721
    %v1297 = vunpack.c.h.b16 %v721
    %v1298 = vunpack.c.l.b16 %v722
    %v1299 = vunpack.c.h.b16 %v722
    %v1300 = vunpack.c.l.b16 %v723
    %v1301 = vunpack.c.h.b16 %v723
    %v1302 = vunpack.c.l.b16 %v724
    %v1303 = vunpack.c.h.b16 %v724
    %v1304 = vunpack.c.l.b16 %v725
    %v1305 = vunpack.c.h.b16 %v725
    %v1306 = vunpack.c.l.b16 %v726
    %v1307 = vunpack.c.h.b16 %v726
    %v1308 = vunpack.c.l.b16 %v727
    %v1309 = vunpack.c.h.b16 %v727
    %v1310 = vunpack.c.l.b16 %v728
    %v1311 = vunpack.c.h.b16 %v728
    %v1312 = vunpack.c.l.b16 %v729
    %v1313 = vunpack.c.h.b16 %v729
    %v1314 = vunpack.c.l.b16 %v730
    %v1315 = vunpack.c.h.b16 %v730
    %v1316 = vunpack.c.l.b16 %v731
    %v1317 = vunpack.c.h.b16 %v731
    %v1318 = vunpack.c.l.b16 %v732
    %v1319 = vunpack.c.h.b16 %v732
    %v1320 = vunpack.c.l.b16 %v733
    %v1321 = vunpack.c.h.b16 %v733
    %v1322 = vunpack.c.l.b16 %v734
    %v1323 = vunpack.c.h.b16 %v734
    %v1324 = vunpack.c.l.b16 %v735
    %v1325 = vunpack.c.h.b16 %v735
    %v1326 = vunpack.c.l.b16 %v736
    %v1327 = vunpack.c.h.b16 %v736
    %v1328 = vunpack.c.l.b16 %v737
    %v1329 = vunpack.c.h.b16 %v737
    %v1330 = vunpack.c.l.b16 %v738
    %v1331 = vunpack.c.h.b16 %v738
    %v1332 = vunpack.c.l.b16 %v739
    %v1333 = vunpack.c.h.b16 %v739
    %v1334 = vunpack.c.l.b16 %v740
    %v1335 = vunpack.c.h.b16 %v740
    %v1336 = vunpack.c.l.b16 %v741
    %v1337 = vunpack.c.h.b16 %v741
    %v1338 = vunpack.c.l.b16 %v742
    %v1339 = vunpack.c.h.b16 %v742
    %v1340 = vunpack.c.l.b16 %v743
    %v1341 = vunpack.c.h.b16 %v743
    %v1342 = vunpack.c.l.b16 %v744
    %v1343 = vunpack.c.h.b16 %v744
    %v1344 = vunpack.c.l.b16 %v745
    %v1345 = vunpack.c.h.b16 %v745
    %v1346 = vunpack.c.l.b16 %v746
    %v1347 = vunpack.c.h.b16 %v746
    %v1348 = vunpack.c.l.b16 %v747
    %v1349 = vunpack.c.h.b16 %v747
    %v1350 = vunpack.c.l.b16 %v748
    %v1351 = vunpack.c.h.b16 %v748
    %v1352 = vunpack.c.l.b16 %v749
    %v1353 = vunpack.c.h.b16 %v749
    %v1354 = vunpack.c.l.b16 %v750
    %v1355 = vunpack.c.h.b16 %v750
    %v1356 = vunpack.c.l.b16 %v751
    %v1357 = vunpack.c.h.b16 %v751
    %v1358 = vunpack.c.l.b16 %v752
    %v1359 = vunpack.c.h.b16 %v752
    %v1360 = vunpack.c.l.b16 %v753
    %v1361 = vunpack.c.h.b16 %v753
    %v1362 = vunpack.c.l.b16 %v754
    %v1363 = vunpack.c.h.b16 %v754
    %v1364 = vunpack.c.l.b16 %v755
    %v1365 = vunpack.c.h.b16 %v755
    %v1366 = vunpack.c.l.b16 %v756
    %v1367 = vunpack.c.h.b16 %v756
    %v1368 = vunpack.c.l.b16 %v757
    %v1369 = vunpack.c.h.b16 %v757
    %v1370 = vunpack.c.l.b16 %v758
    %v1371 = vunpack.c.h.b16 %v758
    %v1372 = vunpack.c.l.b16 %v759
    %v1373 = vunpack.c.h.b16 %v759
    %v1374 = vunpack.c.l.b16 %v760
    %v1375 = vunpack.c.h.b16 %v760
    %v1376 = vunpack.c.l.b16 %v761
    %v1377 = vunpack.c.h.b16 %v761
    %v1378 = vunpack.c.l.b16 %v762
    %v1379 = vunpack.c.h.b16 %v762
    %v1380 = vunpack.c.l.b16 %v763
    %v1381 = vunpack.c.h.b16 %v763
    %v1382 = vunpack.c.l.b16 %v764
    %v1383 = vunpack.c.h.b16 %v764
    %v1384 = vunpack.c.l.b16 %v765
    %v1385 = vunpack.c.h.b16 %v765
    %v1386 = vunpack.c.l.b16 %v766
    %v1387 = vunpack.c.h.b16 %v766
    %v1388 = vunpack.c.l.b16 %v767
    %v1389 = vunpack.c.h.b16 %v767
    %v1390 = vunpack.c.l.b16 %v768
    %v1391 = vunpack.c.h.b16 %v768
    %v1392 = vunpack.c.l.b16 %v769
    %v1393 = vunpack.c.h.b16 %v769
    %v1394 = vunpack.c.l.b16 %v770
    %v1395 = vunpack.c.h.b16 %v770
    %v1396 = vunpack.c.l.b16 %v771
    %v1397 = vunpack.c.h.b16 %v771
    %v1398 = vunpack.c.l.b16 %v772
    %v1399 = vunpack.c.h.b16 %v772
    %v1400 = vunpack.c.l.b16 %v773
    %v1401 = vunpack.c.h.b16 %v773
    %v1402 = vunpack.c.l.b16 %v774
    %v1403 = vunpack.c.h.b16 %v774
    %v1404 = vunpack.c.l.b16 %v775
    %v1405 = vunpack.c.h.b16 %v775
    %v1406 = vunpack.c.l.b16 %v776
    %v1407 = vunpack.c.h.b16 %v776
    %v1408 = vunpack.c.l.b16 %v777
    %v1409 = vunpack.c.h.b16 %v777
    %v1410 = vunpack.c.l.b16 %v778
    %v1411 = vunpack.c.h.b16 %v778
    %v1412 = vunpack.c.l.b16 %v779
    %v1413 = vunpack.c.h.b16 %v779
    %v1414 = vunpack.c.l.b16 %v780
    %v1415 = vunpack.c.h.b16 %v780
    %v1416 = vunpack.c.l.b16 %v781
    %v1417 = vunpack.c.h.b16 %v781
    %v1418 = vunpack.c.l.b16 %v782
    %v1419 = vunpack.c.h.b16 %v782
    %v1420 = vunpack.c.l.b16 %v783
    %v1421 = vunpack.c.h.b16 %v783
    %v1422 = vunpack.c.l.b16 %v784
    %v1423 = vunpack.c.h.b16 %v784
    %v1424 = vunpack.c.l.b16 %v785
    %v1425 = vunpack.c.h.b16 %v785
    %v1426 = vunpack.c.l.b16 %v786
    %v1427 = vunpack.c.h.b16 %v786
    %v1428 = vunpack.c.l.b16 %v787
    %v1429 = vunpack.c.h.b16 %v787
    %v1430 = vunpack.c.l.b16 %v788
    %v1431 = vunpack.c.h.b16 %v788
    %v1432 = vunpack.c.l.b16 %v789
    %v1433 = vunpack.c.h.b16 %v789
    %v1434 = vunpack.c.l.b16 %v790
    %v1435 = vunpack.c.h.b16 %v790
    %v1436 = vunpack.c.l.b16 %v791
    %v1437 = vunpack.c.h.b16 %v791
    %v1438 = vunpack.c.l.b16 %v792
    %v1439 = vunpack.c.h.b16 %v792
    %v1440 = vunpack.c.l.b16 %v793
    %v1441 = vunpack.c.h.b16 %v793
    %v1442 = vunpack.c.l.b16 %v794
    %v1443 = vunpack.c.h.b16 %v794
    %v1444 = vunpack.c.l.b16 %v795
    %v1445 = vunpack.c.h.b16 %v795
    %v1446 = vunpack.c.l.b16 %v796
    %v1447 = vunpack.c.h.b16 %v796
    %v1448 = vunpack.c.l.b16 %v797
    %v1449 = vunpack.c.h.b16 %v797
    %v1450 = vunpack.c.l.b16 %v798
    %v1451 = vunpack.c.h.b16 %v798
    %v1452 = vunpack.c.l.b16 %v799
    %v1453 = vunpack.c.h.b16 %v799
    %v1454 = vunpack.c.l.b16 %v800
    %v1455 = vunpack.c.h.b16 %v800
    %v1456 = vunpack.c.l.b16 %v801
    %v1457 = vunpack.c.h.b16 %v801
    %v1458 = vunpack.c.l.b16 %v802
    %v1459 = vunpack.c.h.b16 %v802
    %v1460 = vunpack.c.l.b16 %v803
    %v1461 = vunpack.c.h.b16 %v803
    %v1462 = vunpack.c.l.b16 %v804
    %v1463 = vunpack.c.h.b16 %v804
    %v1464 = vunpack.c.l.b16 %v805
    %v1465 = vunpack.c.h.b16 %v805
    %v1466 = vunpack.c.l.b16 %v806
    %v1467 = vunpack.c.h.b16 %v806
    %v1468 = vunpack.c.l.b16 %v807
    %v1469 = vunpack.c.h.b16 %v807
    %v1470 = vunpack.c.l.b16 %v808
    %v1471 = vunpack.c.h.b16 %v808
    %v1472 = vunpack.c.l.b16 %v809
    %v1473 = vunpack.c.h.b16 %v809
    %v1474 = vunpack.c.l.b16 %v810
    %v1475 = vunpack.c.h.b16 %v810
    %v1476 = vunpack.c.l.b16 %v811
    %v1477 = vunpack.c.h.b16 %v811
    %v1478 = vunpack.c.l.b16 %v812
    %v1479 = vunpack.c.h.b16 %v812
    %v1480 = vunpack.c.l.b16 %v813
    %v1481 = vunpack.c.h.b16 %v813
    %v1482 = vunpack.c.l.b16 %v814
    %v1483 = vunpack.c.h.b16 %v814
    %v1484 = vunpack.c.l.b16 %v815
    %v1485 = vunpack.c.h.b16 %v815
    %v1486 = vunpack.c.l.b16 %v816
    %v1487 = vunpack.c.h.b16 %v816
    %v1488 = vunpack.c.l.b16 %v817
    %v1489 = vunpack.c.h.b16 %v817
    %v1490 = vunpack.c.l.b16 %v818
    %v1491 = vunpack.c.h.b16 %v818
    %v1492 = vunpack.c.l.b16 %v819
    %v1493 = vunpack.c.h.b16 %v819
    %v1494 = vunpack.c.l.b16 %v820
    %v1495 = vunpack.c.h.b16 %v820
    %v1496 = vunpack.c.l.b16 %v821
    %v1497 = vunpack.c.h.b16 %v821
    %v1498 = vunpack.c.l.b16 %v822
    %v1499 = vunpack.c.h.b16 %v822
    %v1500 = vunpack.c.l.b16 %v823
    %v1501 = vunpack.c.h.b16 %v823
    %v1502 = vunpack.c.l.b16 %v824
    %v1503 = vunpack.c.h.b16 %v824
    %v1504 = vunpack.c.l.b16 %v825
    %v1505 = vunpack.c.h.b16 %v825
    %v1506 = vunpack.c.l.b16 %v826
    %v1507 = vunpack.c.h.b16 %v826
    %v1508 = vunpack.c.l.b16 %v827
    %v1509 = vunpack.c.h.b16 %v827
    %v1510 = vunpack.c.l.b16 %v828
    %v1511 = vunpack.c.h.b16 %v828
    %v1512 = vunpack.c.l.b16 %v829
    %v1513 = vunpack.c.h.b16 %v829
    %v1514 = vunpack.c.l.b16 %v830
    %v1515 = vunpack.c.h.b16 %v830
    %v1516 = vunpack.c.l.b16 %v831
    %v1517 = vunpack.c.h.b16 %v831
    %v1518 = vunpack.c.l.b16 %v832
    %v1519 = vunpack.c.h.b16 %v832
    %v1520 = vunpack.c.l.b16 %v833
    %v1521 = vunpack.c.h.b16 %v833
    %v1522 = vunpack.c.l.b16 %v834
    %v1523 = vunpack.c.h.b16 %v834
    %v1524 = vunpack.c.l.b16 %v835
    %v1525 = vunpack.c.h.b16 %v835
    %v1526 = vunpack.c.l.b16 %v836
    %v1527 = vunpack.c.h.b16 %v836
    %v1528 = vunpack.c.l.b16 %v837
    %v1529 = vunpack.c.h.b16 %v837
    %v1530 = vunpack.c.l.b16 %v838
    %v1531 = vunpack.c.h.b16 %v838
    %v1532 = vunpack.c.l.b16 %v839
    %v1533 = vunpack.c.h.b16 %v839
    %v1534 = vunpack.c.l.b16 %v840
    %v1535 = vunpack.c.h.b16 %v840
    %v1536 = vunpack.c.l.b16 %v841
    %v1537 = vunpack.c.h.b16 %v841
    %v1538 = vunpack.c.l.b16 %v842
    %v1539 = vunpack.c.h.b16 %v842
    %v1540 = vunpack.c.l.b16 %v843
    %v1541 = vunpack.c.h.b16 %v843
    %v1542 = vunpack.c.l.b16 %v844
    %v1543 = vunpack.c.h.b16 %v844
    %v1544 = vunpack.c.l.b16 %v845
    %v1545 = vunpack.c.h.b16 %v845
    %v1546 = vunpack.c.l.b16 %v846
    %v1547 = vunpack.c.h.b16 %v846
    %v1548 = vunpack.c.l.b16 %v847
    %v1549 = vunpack.c.h.b16 %v847
    %v1550 = vunpack.c.l.b16 %v848
    %v1551 = vunpack.c.h.b16 %v848
    %v1552 = vunpack.c.l.b16 %v849
    %v1553 = vunpack.c.h.b16 %v849
    %v1554 = vunpack.c.l.b16 %v850
    %v1555 = vunpack.c.h.b16 %v850
    %v1556 = vunpack.c.l.b16 %v851
    %v1557 = vunpack.c.h.b16 %v851
    %v1558 = vunpack.c.l.b16 %v852
    %v1559 = vunpack.c.h.b16 %v852
    %v1560 = vunpack.c.l.b16 %v853
    %v1561 = vunpack.c.h.b16 %v853
    %v1562 = vunpack.c.l.b16 %v854
    %v1563 = vunpack.c.h.b16 %v854
    %v1564 = vunpack.c.l.b16 %v855
    %v1565 = vunpack.c.h.b16 %v855
    %v1566 = vunpack.c.l.b16 %v856
    %v1567 = vunpack.c.h.b16 %v856
    %v1568 = vunpack.c.l.b16 %v857
    %v1569 = vunpack.c.h.b16 %v857
    %v1570 = vunpack.c.l.b16 %v858
    %v1571 = vunpack.c.h.b16 %v858
    %v1572 = vunpack.c.l.b16 %v859
    %v1573 = vunpack.c.h.b16 %v859
    %v1574 = vunpack.c.l.b16 %v860
    %v1575 = vunpack.c.h.b16 %v860
    %v1576 = vunpack.c.l.b16 %v861
    %v1577 = vunpack.c.h.b16 %v861
    %v1578 = vunpack.c.l.b16 %v862
    %v1579 = vunpack.c.h.b16 %v862
    %v1580 = vunpack.c.l.b16 %v863
    %v1581 = vunpack.c.h.b16 %v863
    %v1582 = vunpack.c.l.b16 %v864
    %v1583 = vunpack.c.h.b16 %v864
    %v1584 = vunpack.c.l.b16 %v865
    %v1585 = vunpack.c.h.b16 %v865
    %v1586 = vunpack.c.l.b16 %v866
    %v1587 = vunpack.c.h.b16 %v866
    %v1588 = vunpack.c.l.b16 %v867
    %v1589 = vunpack.c.h.b16 %v867
    %v1590 = vunpack.c.l.b16 %v868
    %v1591 = vunpack.c.h.b16 %v868
    %v1592 = vunpack.c.l.b16 %v869
    %v1593 = vunpack.c.h.b16 %v869
    %v1594 = vunpack.c.l.b16 %v870
    %v1595 = vunpack.c.h.b16 %v870
    %v1596 = vunpack.c.l.b16 %v871
    %v1597 = vunpack.c.h.b16 %v871
    %v1598 = vunpack.c.l.b16 %v872
    %v1599 = vunpack.c.h.b16 %v872
    %v1600 = vunpack.c.l.b16 %v873
    %v1601 = vunpack.c.h.b16 %v873
    %v1602 = vunpack.c.l.b16 %v874
    %v1603 = vunpack.c.h.b16 %v874
    %v1604 = vunpack.c.l.b16 %v875
    %v1605 = vunpack.c.h.b16 %v875
    %v1606 = vunpack.c.l.b16 %v876
    %v1607 = vunpack.c.h.b16 %v876
    %v1608 = vunpack.c.l.b16 %v877
    %v1609 = vunpack.c.h.b16 %v877
    %v1610 = vunpack.c.l.b16 %v878
    %v1611 = vunpack.c.h.b16 %v878
    %v1612 = vunpack.c.l.b16 %v879
    %v1613 = vunpack.c.h.b16 %v879
    %v1614 = vunpack.c.l.b16 %v880
    %v1615 = vunpack.c.h.b16 %v880
    %v1616 = vunpack.c.l.b16 %v881
    %v1617 = vunpack.c.h.b16 %v881
    %v1618 = vunpack.c.l.b16 %v882
    %v1619 = vunpack.c.h.b16 %v882
    %v1620 = vunpack.c.l.b16 %v883
    %v1621 = vunpack.c.h.b16 %v883
    %v1622 = vunpack.c.l.b16 %v884
    %v1623 = vunpack.c.h.b16 %v884
    %v1624 = vunpack.c.l.b16 %v885
    %v1625 = vunpack.c.h.b16 %v885
    %v1626 = vunpack.c.l.b16 %v886
    %v1627 = vunpack.c.h.b16 %v886
    %v1628 = vunpack.c.l.b16 %v887
    %v1629 = vunpack.c.h.b16 %v887
    %v1630 = vunpack.c.l.b16 %v888
    %v1631 = vunpack.c.h.b16 %v888
    %v1632 = vunpack.c.l.b16 %v889
    %v1633 = vunpack.c.h.b16 %v889
    %v1634 = vunpack.c.l.b16 %v890
    %v1635 = vunpack.c.h.b16 %v890
    %v1636 = vunpack.c.l.b16 %v891
    %v1637 = vunpack.c.h.b16 %v891
    %v1638 = vunpack.c.l.b16 %v892
    %v1639 = vunpack.c.h.b16 %v892
    %v1640 = vunpack.c.l.b16 %v893
    %v1641 = vunpack.c.h.b16 %v893
    %v1642 = vunpack.c.l.b16 %v894
    %v1643 = vunpack.c.h.b16 %v894
    %v1644 = vunpack.c.l.b16 %v895
    %v1645 = vunpack.c.h.b16 %v895
    %v1646 = vunpack.c.l.b16 %v896
    %v1647 = vunpack.c.h.b16 %v896
    %v1648 = vunpack.c.l.b16 %v897
    %v1649 = vunpack.c.h.b16 %v897
    %v1650 = vunpack.c.l.b16 %v898
    %v1651 = vunpack.c.h.b16 %v898
    %v1652 = vunpack.c.l.b16 %v899
    %v1653 = vunpack.c.h.b16 %v899
    %v1654 = vunpack.c.l.b16 %v900
    %v1655 = vunpack.c.h.b16 %v900
    %v1656 = vunpack.c.l.b16 %v901
    %v1657 = vunpack.c.h.b16 %v901
    %v1658 = vunpack.c.l.b16 %v902
    %v1659 = vunpack.c.h.b16 %v902
    %v1660 = vunpack.c.l.b16 %v903
    %v1661 = vunpack.c.h.b16 %v903
    %v1662 = vunpack.c.l.b16 %v904
    %v1663 = vunpack.c.h.b16 %v904
    %v1664 = vunpack.c.l.b16 %v905
    %v1665 = vunpack.c.h.b16 %v905
    %v1666 = vunpack.c.l.b16 %v906
    %v1667 = vunpack.c.h.b16 %v906
    %v1668 = vunpack.c.l.b16 %v907
    %v1669 = vunpack.c.h.b16 %v907
    %v1670 = vunpack.c.l.b16 %v908
    %v1671 = vunpack.c.h.b16 %v908
    %v1672 = vunpack.c.l.b16 %v909
    %v1673 = vunpack.c.h.b16 %v909
    %v1674 = vunpack.c.l.b16 %v910
    %v1675 = vunpack.c.h.b16 %v910
    %v1676 = vunpack.c.l.b16 %v911
    %v1677 = vunpack.c.h.b16 %v911
    %v1678 = vunpack.c.l.b16 %v912
    %v1679 = vunpack.c.h.b16 %v912
    %v1680 = vunpack.c.l.b16 %v913
    %v1681 = vunpack.c.h.b16 %v913
    %v1682 = vunpack.c.l.b16 %v914
    %v1683 = vunpack.c.h.b16 %v914
    %v1684 = vunpack.c.l.b16 %v915
    %v1685 = vunpack.c.h.b16 %v915
    %v1686 = vunpack.c.l.b16 %v916
    %v1687 = vunpack.c.h.b16 %v916
    %v1688 = vunpack.c.l.b16 %v917
    %v1689 = vunpack.c.h.b16 %v917
    %v1690 = vunpack.c.l.b16 %v918
    %v1691 = vunpack.c.h.b16 %v918
    %v1692 = vunpack.c.l.b16 %v919
    %v1693 = vunpack.c.h.b16 %v919
    %v1694 = vunpack.c.l.b16 %v920
    %v1695 = vunpack.c.h.b16 %v920
    %v1696 = vunpack.c.l.b16 %v921
    %v1697 = vunpack.c.h.b16 %v921
    %v1698 = vunpack.c.l.b16 %v922
    %v1699 = vunpack.c.h.b16 %v922
    %v1700 = vunpack.c.l.b16 %v923
    %v1701 = vunpack.c.h.b16 %v923
    %v1702 = vunpack.c.l.b16 %v924
    %v1703 = vunpack.c.h.b16 %v924
    %v1704 = vunpack.c.l.b16 %v925
    %v1705 = vunpack.c.h.b16 %v925
    %v1706 = vunpack.c.l.b16 %v926
    %v1707 = vunpack.c.h.b16 %v926
    %v1708 = vunpack.c.l.b16 %v927
    %v1709 = vunpack.c.h.b16 %v927
    %v1710 = vunpack.c.l.b16 %v928
    %v1711 = vunpack.c.h.b16 %v928
    %v1712 = vunpack.c.l.b16 %v929
    %v1713 = vunpack.c.h.b16 %v929
    %v1714 = vunpack.c.l.b16 %v930
    %v1715 = vunpack.c.h.b16 %v930
    %v1716 = vunpack.c.l.b16 %v931
    %v1717 = vunpack.c.h.b16 %v931
    %v1718 = vunpack.c.l.b16 %v932
    %v1719 = vunpack.c.h.b16 %v932
    %v1720 = vunpack.c.l.b16 %v933
    %v1721 = vunpack.c.h.b16 %v933
    %v1722 = vunpack.c.l.b16 %v934
    %v1723 = vunpack.c.h.b16 %v934
    %v1724 = vunpack.c.l.b16 %v935
    %v1725 = vunpack.c.h.b16 %v935
    %v1726 = vunpack.c.l.b16 %v936
    %v1727 = vunpack.c.h.b16 %v936
    %v1728 = vunpack.c.l.b16 %v937
    %v1729 = vunpack.c.h.b16 %v937
    %v1730 = vunpack.c.l.b16 %v938
    %v1731 = vunpack.c.h.b16 %v938
    %v1732 = vunpack.c.l.b16 %v939
    %v1733 = vunpack.c.h.b16 %v939
    %v1734 = vunpack.c.l.b16 %v940
    %v1735 = vunpack.c.h.b16 %v940
    %v1736 = vunpack.c.l.b16 %v941
    %v1737 = vunpack.c.h.b16 %v941
    %v1738 = vunpack.c.l.b16 %v942
    %v1739 = vunpack.c.h.b16 %v942
    %v1740 = vunpack.c.l.b16 %v943
    %v1741 = vunpack.c.h.b16 %v943
    %v1742 = vunpack.c.l.b16 %v944
    %v1743 = vunpack.c.h.b16 %v944
    %v1744 = vunpack.c.l.b16 %v945
    %v1745 = vunpack.c.h.b16 %v945
    %v1746 = vunpack.c.l.b16 %v946
    %v1747 = vunpack.c.h.b16 %v946
    %v1748 = vunpack.c.l.b16 %v947
    %v1749 = vunpack.c.h.b16 %v947
    %v1750 = vunpack.c.l.b16 %v948
    %v1751 = vunpack.c.h.b16 %v948
    %v1752 = vunpack.c.l.b16 %v949
    %v1753 = vunpack.c.h.b16 %v949
    %v1754 = vunpack.c.l.b16 %v950
    %v1755 = vunpack.c.h.b16 %v950
    %v1756 = vunpack.c.l.b16 %v951
    %v1757 = vunpack.c.h.b16 %v951
    %v1758 = vunpack.c.l.b16 %v952
    %v1759 = vunpack.c.h.b16 %v952
    %v1760 = vunpack.c.l.b16 %v953
    %v1761 = vunpack.c.h.b16 %v953
    %v1762 = vunpack.c.l.b16 %v954
    %v1763 = vunpack.c.h.b16 %v954
    %v1764 = vunpack.c.l.b16 %v955
    %v1765 = vunpack.c.h.b16 %v955
    %v1766 = vpack.c.b16 %v1262, %v1254
    %v1767 = vpack.c.b16 %v1263, %v1255
    %v1768 = vpack.c.b16 %v1264, %v1256
    %v1769 = vpack.c.b16 %v1265, %v1257
    %v1770 = vpack.c.b16 %v1266, %v1258
    %v1771 = vpack.c.b16 %v1267, %v1259
    %v1772 = vpack.c.b16 %v1268, %v1260
    %v1773 = vpack.c.b16 %v1269, %v1261
    %v1774 = vpack.c.b16 %v1278, %v1270
    %v1775 = vpack.c.b16 %v1279, %v1271
    %v1776 = vpack.c.b16 %v1280, %v1272
    %v1777 = vpack.c.b16 %v1281, %v1273
    %v1778 = vpack.c.b16 %v1282, %v1274
    %v1779 = vpack.c.b16 %v1283, %v1275
    %v1780 = vpack.c.b16 %v1284, %v1276
    %v1781 = vpack.c.b16 %v1285, %v1277
    %v1782 = vpack.c.b16 %v1294, %v1286
    %v1783 = vpack.c.b16 %v1295, %v1287
    %v1784 = vpack.c.b16 %v1296, %v1288
    %v1785 = vpack.c.b16 %v1297, %v1289
    %v1786 = vpack.c.b16 %v1298, %v1290
    %v1787 = vpack.c.b16 %v1299, %v1291
    %v1788 = vpack.c.b16 %v1300, %v1292
    %v1789 = vpack.c.b16 %v1301, %v1293
    %v1790 = vpack.c.b16 %v1310, %v1302
    %v1791 = vpack.c.b16 %v1311, %v1303
    %v1792 = vpack.c.b16 %v1312, %v1304
    %v1793 = vpack.c.b16 %v1313, %v1305
    %v1794 = vpack.c.b16 %v1314, %v1306
    %v1795 = vpack.c.b16 %v1315, %v1307
    %v1796 = vpack.c.b16 %v1316, %v1308
    %v1797 = vpack.c.b16 %v1317, %v1309
    %v1798 = vpack.c.b16 %v1326, %v1318
    %v1799 = vpack.c.b16 %v1327, %v1319
    %v1800 = vpack.c.b16 %v1328, %v1320
    %v1801 = vpack.c.b16 %v1329, %v1321
    %v1802 = vpack.c.b16 %v1330, %v1322
    %v1803 = vpack.c.b16 %v1331, %v1323
    %v1804 = vpack.c.b16 %v1332, %v1324
    %v1805 = vpack.c.b16 %v1333, %v1325
    %v1806 = vpack.c.b16 %v1342, %v1334
    %v1807 = vpack.c.b16 %v1343, %v1335
    %v1808 = vpack.c.b16 %v1344, %v1336
    %v1809 = vpack.c.b16 %v1345, %v1337
    %v1810 = vpack.c.b16 %v1346, %v1338
    %v1811 = vpack.c.b16 %v1347, %v1339
    %v1812 = vpack.c.b16 %v1348, %v1340
    %v1813 = vpack.c.b16 %v1349, %v1341
    %v1814 = vpack.c.b16 %v1358, %v1350
    %v1815 = vpack.c.b16 %v1359, %v1351
    %v1816 = vpack.c.b16 %v1360, %v1352
    %v1817 = vpack.c.b16 %v1361, %v1353
    %v1818 = vpack.c.b16 %v1362, %v1354
    %v1819 = vpack.c.b16 %v1363, %v1355
    %v1820 = vpack.c.b16 %v1364, %v1356
    %v1821 = vpack.c.b16 %v1365, %v1357
    %v1822 = vpack.c.b16 %v1374, %v1366
    %v1823 = vpack.c.b16 %v1375, %v1367
    %v1824 = vpack.c.b16 %v1376, %v1368
    %v1825 = vpack.c.b16 %v1377, %v1369
    %v1826 = vpack.c.b16 %v1378, %v1370
    %v1827 = vpack.c.b16 %v1379, %v1371
    %v1828 = vpack.c.b16 %v1380, %v1372
    %v1829 = vpack.c.b16 %v1381, %v1373
    %v1830 = vpack.c.b16 %v1390, %v1382
    %v1831 = vpack.c.b16 %v1391, %v1383
    %v1832 = vpack.c.b16 %v1392, %v1384
    %v1833 = vpack.c.b16 %v1393, %v1385
    %v1834 = vpack.c.b16 %v1394, %v1386
    %v1835 = vpack.c.b16 %v1395, %v1387
    %v1836 = vpack.c.b16 %v1396, %v1388
    %v1837 = vpack.c.b16 %v1397, %v1389
    %v1838 = vpack.c.b16 %v1406, %v1398
    %v1839 = vpack.c.b16 %v1407, %v1399
    %v1840 = vpack.c.b16 %v1408, %v1400
    %v1841 = vpack.c.b16 %v1409, %v1401
    %v1842 = vpack.c.b16 %v1410, %v1402
    %v1843 = vpack.c.b16 %v1411, %v1403
    %v1844 = vpack.c.b16 %v1412, %v1404
    %v1845 = vpack.c.b16 %v1413, %v1405
    %v1846 = vpack.c.b16 %v1422, %v1414
    %v1847 = vpack.c.b16 %v1423, %v1415
    %v1848 = vpack.c.b16 %v1424, %v1416
    %v1849 = vpack.c.b16 %v1425, %v1417
    %v1850 = vpack.c.b16 %v1426, %v1418
    %v1851 = vpack.c.b16 %v1427, %v1419
    %v1852 = vpack.c.b16 %v1428, %v1420
    %v1853 = vpack.c.b16 %v1429, %v1421
    %v1854 = vpack.c.b16 %v1438, %v1430
    %v1855 = vpack.c.b16 %v1439, %v1431
    %v1856 = vpack.c.b16 %v1440, %v1432
    %v1857 = vpack.c.b16 %v1441, %v1433
    %v1858 = vpack.c.b16 %v1442, %v1434
    %v1859 = vpack.c.b16 %v1443, %v1435
    %v1860 = vpack.c.b16 %v1444, %v1436
    %v1861 = vpack.c.b16 %v1445, %v1437
    %v1862 = vpack.c.b16 %v1454, %v1446
    %v1863 = vpack.c.b16 %v1455, %v1447
    %v1864 = vpack.c.b16 %v1456, %v1448
    %v1865 = vpack.c.b16 %v1457, %v1449
    %v1866 = vpack.c.b16 %v1458, %v1450
    %v1867 = vpack.c.b16 %v1459, %v1451
    %v1868 = vpack.c.b16 %v1460, %v1452
    %v1869 = vpack.c.b16 %v1461, %v1453
    %v1870 = vpack.c.b16 %v1470, %v1462
    %v1871 = vpack.c.b16 %v1471, %v1463
    %v1872 = vpack.c.b16 %v1472, %v1464
    %v1873 = vpack.c.b16 %v1473, %v1465
    %v1874 = vpack.c.b16 %v1474, %v1466
    %v1875 = vpack.c.b16 %v1475, %v1467
    %v1876 = vpack.c.b16 %v1476, %v1468
    %v1877 = vpack.c.b16 %v1477, %v1469
    %v1878 = vpack.c.b16 %v1486, %v1478
    %v1879 = vpack.c.b16 %v1487, %v1479
    %v1880 = vpack.c.b16 %v1488, %v1480
    %v1881 = vpack.c.b16 %v1489, %v1481
    %v1882 = vpack.c.b16 %v1490, %v1482
    %v1883 = vpack.c.b16 %v1491, %v1483
    %v1884 = vpack.c.b16 %v1492, %v1484
    %v1885 = vpack.c.b16 %v1493, %v1485
    %v1886 = vpack.c.b16 %v1502, %v1494
    %v1887 = vpack.c.b16 %v1503, %v1495
    %v1888 = vpack.c.b16 %v1504, %v1496
    %v1889 = vpack.c.b16 %v1505, %v1497
    %v1890 = vpack.c.b16 %v1506, %v1498
    %v1891 = vpack.c.b16 %v1507, %v1499
    %v1892 = vpack.c.b16 %v1508, %v1500
    %v1893 = vpack.c.b16 %v1509, %v1501
    %v1894 = vpack.c.b16 %v1518, %v1510
    %v1895 = vpack.c.b16 %v1519, %v1511
    %v1896 = vpack.c.b16 %v1520, %v1512
    %v1897 = vpack.c.b16 %v1521, %v1513
    %v1898 = vpack.c.b16 %v1522, %v1514
    %v1899 = vpack.c.b16 %v1523, %v1515
    %v1900 = vpack.c.b16 %v1524, %v1516
    %v1901 = vpack.c.b16 %v1525, %v1517
    %v1902 = vpack.c.b16 %v1534, %v1526
    %v1903 = vpack.c.b16 %v1535, %v1527
    %v1904 = vpack.c.b16 %v1536, %v1528
    %v1905 = vpack.c.b16 %v1537, %v1529
    %v1906 = vpack.c.b16 %v1538, %v1530
    %v1907 = vpack.c.b16 %v1539, %v1531
    %v1908 = vpack.c.b16 %v1540, %v1532
    %v1909 = vpack.c.b16 %v1541, %v1533
    %v1910 = vpack.c.b16 %v1550, %v1542
    %v1911 = vpack.c.b16 %v1551, %v1543
    %v1912 = vpack.c.b16 %v1552, %v1544
    %v1913 = vpack.c.b16 %v1553, %v1545
    %v1914 = vpack.c.b16 %v1554, %v1546
    %v1915 = vpack.c.b16 %v1555, %v1547
    %v1916 = vpack.c.b16 %v1556, %v1548
    %v1917 = vpack.c.b16 %v1557, %v1549
    %v1918 = vpack.c.b16 %v1566, %v1558
    %v1919 = vpack.c.b16 %v1567, %v1559
    %v1920 = vpack.c.b16 %v1568, %v1560
    %v1921 = vpack.c.b16 %v1569, %v1561
    %v1922 = vpack.c.b16 %v1570, %v1562
    %v1923 = vpack.c.b16 %v1571, %v1563
    %v1924 = vpack.c.b16 %v1572, %v1564
    %v1925 = vpack.c.b16 %v1573, %v1565
    %v1926 = vpack.c.b16 %v1582, %v1574
    %v1927 = vpack.c.b16 %v1583, %v1575
    %v1928 = vpack.c.b16 %v1584, %v1576
    %v1929 = vpack.c.b16 %v1585, %v1577
    %v1930 = vpack.c.b16 %v1586, %v1578
    %v1931 = vpack.c.b16 %v1587, %v1579
    %v1932 = vpack.c.b16 %v1588, %v1580
    %v1933 = vpack.c.b16 %v1589, %v1581
    %v1934 = vpack.c.b16 %v1598, %v1590
    %v1935 = vpack.c.b16 %v1599, %v1591
    %v1936 = vpack.c.b16 %v1600, %v1592
    %v1937 = vpack.c.b16 %v1601, %v1593
    %v1938 = vpack.c.b16 %v1602, %v1594
    %v1939 = vpack.c.b16 %v1603, %v1595
    %v1940 = vpack.c.b16 %v1604, %v1596
    %v1941 = vpack.c.b16 %v1605, %v1597
    %v1942 = vpack.c.b16 %v1614, %v1606
    %v1943 = vpack.c.b16 %v1615, %v1607
    %v1944 = vpack.c.b16 %v1616, %v1608
    %v1945 = vpack.c.b16 %v1617, %v1609
    %v1946 = vpack.c.b16 %v1618, %v1610
    %v1947 = vpack.c.b16 %v1619, %v1611
    %v1948 = vpack.c.b16 %v1620, %v1612
    %v1949 = vpack.c.b16 %v1621, %v1613
    %v1950 = vpack.c.b16 %v1630, %v1622
    %v1951 = vpack.c.b16 %v1631, %v1623
    %v1952 = vpack.c.b16 %v1632, %v1624
    %v1953 = vpack.c.b16 %v1633, %v1625
    %v1954 = vpack.c.b16 %v1634, %v1626
    %v1955 = vpack.c.b16 %v1635, %v1627
    %v1956 = vpack.c.b16 %v1636, %v1628
    %v1957 = vpack.c.b16 %v1637, %v1629
    %v1958 = vpack.c.b16 %v1646, %v1638
    %v1959 = vpack.c.b16 %v1647, %v1639
    %v1960 = vpack.c.b16 %v1648, %v1640
    %v1961 = vpack.c.b16 %v1649, %v1641
    %v1962 = vpack.c.b16 %v1650, %v1642
    %v1963 = vpack.c.b16 %v1651, %v1643
    %v1964 = vpack.c.b16 %v1652, %v1644
    %v1965 = vpack.c.b16 %v1653, %v1645
    %v1966 = vpack.c.b16 %v1662, %v1654
    %v1967 = vpack.c.b16 %v1663, %v1655
    %v1968 = vpack.c.b16 %v1664, %v1656
    %v1969 = vpack.c.b16 %v1665, %v1657
    %v1970 = vpack.c.b16 %v1666, %v1658
    %v1971 = vpack.c.b16 %v1667, %v1659
    %v1972 = vpack.c.b16 %v1668, %v1660
    %v1973 = vpack.c.b16 %v1669, %v1661
    %v1974 = vpack.c.b16 %v1678, %v1670
    %v1975 = vpack.c.b16 %v1679, %v1671
    %v1976 = vpack.c.b16 %v1680, %v1672
    %v1977 = vpack.c.b16 %v1681, %v1673
    %v1978 = vpack.c.b16 %v1682, %v1674
    %v1979 = vpack.c.b16 %v1683, %v1675
    %v1980 = vpack.c.b16 %v1684, %v1676
    %v1981 = vpack.c.b16 %v1685, %v1677
    %v1982 = vpack.c.b16 %v1694, %v1686
    %v1983 = vpack.c.b16 %v1695, %v1687
    %v1984 = vpack.c.b16 %v1696, %v1688
    %v1985 = vpack.c.b16 %v1697, %v1689
    %v1986 = vpack.c.b16 %v1698, %v1690
    %v1987 = vpack.c.b16 %v1699, %v1691
    %v1988 = vpack.c.b16 %v1700, %v1692
    %v1989 = vpack.c.b16 %v1701, %v1693
    %v1990 = vpack.c.b16 %v1710, %v1702
    %v1991 = vpack.c.b16 %v1711, %v1703
    %v1992 = vpack.c.b16 %v1712, %v1704
    %v1993 = vpack.c.b16 %v1713, %v1705
    %v1994 = vpack.c.b16 %v1714, %v1706
    %v1995 = vpack.c.b16 %v1715, %v1707
    %v1996 = vpack.c.b16 %v1716, %v1708
    %v1997 = vpack.c.b16 %v1717, %v1709
    %v1998 = vpack.c.b16 %v1726, %v1718
    %v1999 = vpack.c.b16 %v1727, %v1719
    %v2000 = vpack.c.b16 %v1728, %v1720
    %v2001 = vpack.c.b16 %v1729, %v1721
    %v2002 = vpack.c.b16 %v1730, %v1722
    %v2003 = vpack.c.b16 %v1731, %v1723
    %v2004 = vpack.c.b16 %v1732, %v1724
    %v2005 = vpack.c.b16 %v1733, %v1725
    %v2006 = vpack.c.b16 %v1742, %v1734
    %v2007 = vpack.c.b16 %v1743, %v1735
    %v2008 = vpack.c.b16 %v1744, %v1736
    %v2009 = vpack.c.b16 %v1745, %v1737
    %v2010 = vpack.c.b16 %v1746, %v1738
    %v2011 = vpack.c.b16 %v1747, %v1739
    %v2012 = vpack.c.b16 %v1748, %v1740
    %v2013 = vpack.c.b16 %v1749, %v1741
    %v2014 = vpack.c.b16 %v1758, %v1750
    %v2015 = vpack.c.b16 %v1759, %v1751
    %v2016 = vpack.c.b16 %v1760, %v1752
    %v2017 = vpack.c.b16 %v1761, %v1753
    %v2018 = vpack.c.b16 %v1762, %v1754
    %v2019 = vpack.c.b16 %v1763, %v1755
    %v2020 = vpack.c.b16 %v1764, %v1756
    %v2021 = vpack.c.b16 %v1765, %v1757
    %2278 = vmatprep.subr.bf16.mxu0 %v1823
    %2279 = vmatpush1.bf16.msra.mxu0 %v1822
    %2280 = vmatprep.subr.bf16.mxu0 %v1815
    %2281 = vmatpush1.bf16.msra.mxu0 %v1814
    %2282 = vmatprep.subr.bf16.mxu0 %v1807
    %2283 = vmatpush1.bf16.msra.mxu0 %v1806
    %2284 = vmatprep.subr.bf16.mxu0 %v1799
    %2285 = vmatpush1.bf16.msra.mxu0 %v1798
    %2286 = vmatprep.subr.bf16.mxu0 %v1791
    %2287 = vmatpush1.bf16.msra.mxu0 %v1790
    %2288 = vmatprep.subr.bf16.mxu0 %v1783
    %2289 = vmatpush1.bf16.msra.mxu0 %v1782
    %2290 = vmatprep.subr.bf16.mxu0 %v1775
    %2291 = vmatpush1.bf16.msra.mxu0 %v1774
    %2292 = vmatprep.subr.bf16.mxu0 %v1767
    %2293 = vmatpush1.bf16.msra.mxu0 %v1766
    %2294 = vmatprep.subr.bf16.mxu0 %v1887
    %2295 = vmatpush2.bf16.msra.mxu0 %v1886
    %2296 = vmatprep.subr.bf16.mxu0 %v1879
    %2297 = vmatpush2.bf16.msra.mxu0 %v1878
    %2298 = vmatprep.subr.bf16.mxu0 %v1871
    %2299 = vmatpush2.bf16.msra.mxu0 %v1870
    %2300 = vmatprep.subr.bf16.mxu0 %v1863
    %2301 = vmatpush2.bf16.msra.mxu0 %v1862
    %2302 = vmatprep.subr.bf16.mxu0 %v1855
    %2303 = vmatpush2.bf16.msra.mxu0 %v1854
    %2304 = vmatprep.subr.bf16.mxu0 %v1847
    %2305 = vmatpush2.bf16.msra.mxu0 %v1846
    %2306 = vmatprep.subr.bf16.mxu0 %v1839
    %2307 = vmatpush2.bf16.msra.mxu0 %v1838
    %2308 = vmatprep.subr.bf16.mxu0 %v1831
    %2309 = vmatpush2.bf16.msra.mxu0 %v1830
    %2310 = vmatprep.mubr.bf16.mxu0 %v697
    %2311 = vmatmul.mubr.bf16.gmra.mxu0 %v696
    %v2312 = vpop.f32.mrf.mxu0
    %v2313 = vadd.f32 %v961, %v2312
    %v2314 = vpop.f32.mrf.mxu0
    %v2315 = vadd.f32 %v965, %v2314
    %v2316 = vpop.f32.mrf.mxu0
    %v2317 = vpop.f32.mrf.mxu0
    %2318 = vdwg.mxu0
    %2319 = vmatprep.subr.bf16.mxu0 %v1951
    %2320 = vmatpush1.bf16.msra.mxu0 %v1950
    %2321 = vmatprep.subr.bf16.mxu0 %v1943
    %2322 = vmatpush1.bf16.msra.mxu0 %v1942
    %2323 = vmatprep.subr.bf16.mxu0 %v1935
    %2324 = vmatpush1.bf16.msra.mxu0 %v1934
    %2325 = vmatprep.subr.bf16.mxu0 %v1927
    %2326 = vmatpush1.bf16.msra.mxu0 %v1926
    %2327 = vmatprep.subr.bf16.mxu0 %v1919
    %2328 = vmatpush1.bf16.msra.mxu0 %v1918
    %2329 = vmatprep.subr.bf16.mxu0 %v1911
    %2330 = vmatpush1.bf16.msra.mxu0 %v1910
    %2331 = vmatprep.subr.bf16.mxu0 %v1903
    %2332 = vmatpush1.bf16.msra.mxu0 %v1902
    %2333 = vmatprep.subr.bf16.mxu0 %v1895
    %2334 = vmatpush1.bf16.msra.mxu0 %v1894
    %2335 = vmatprep.subr.bf16.mxu0 %v2015
    %2336 = vmatpush2.bf16.msra.mxu0 %v2014
    %2337 = vmatprep.subr.bf16.mxu0 %v2007
    %2338 = vmatpush2.bf16.msra.mxu0 %v2006
    %2339 = vmatprep.subr.bf16.mxu0 %v1999
    %2340 = vmatpush2.bf16.msra.mxu0 %v1998
    %2341 = vmatprep.subr.bf16.mxu0 %v1991
    %2342 = vmatpush2.bf16.msra.mxu0 %v1990
    %2343 = vmatprep.subr.bf16.mxu0 %v1983
    %2344 = vmatpush2.bf16.msra.mxu0 %v1982
    %2345 = vmatprep.subr.bf16.mxu0 %v1975
    %2346 = vmatpush2.bf16.msra.mxu0 %v1974
    %2347 = vmatprep.subr.bf16.mxu0 %v1967
    %2348 = vmatpush2.bf16.msra.mxu0 %v1966
    %2349 = vmatprep.subr.bf16.mxu0 %v1959
    %2350 = vmatpush2.bf16.msra.mxu0 %v1958
    %2351 = vmatprep.mubr.bf16.mxu0 %v699
    %2352 = vmatmul.mubr.bf16.gmra.mxu0 %v698
    %v2353 = vpop.f32.mrf.mxu0
    %v2354 = vadd.f32 %v2313, %v2353
    %v2355 = vpop.f32.mrf.mxu0
    %v2356 = vadd.f32 %v2315, %v2355
    %v2357 = vpop.f32.mrf.mxu0
    %v2358 = vpop.f32.mrf.mxu0
    %2359 = vdwg.mxu0
    %2360 = vmatprep.subr.bf16.mxu0 %v1825
    %2361 = vmatpush1.bf16.msra.mxu0 %v1824
    %2362 = vmatprep.subr.bf16.mxu0 %v1817
    %2363 = vmatpush1.bf16.msra.mxu0 %v1816
    %2364 = vmatprep.subr.bf16.mxu0 %v1809
    %2365 = vmatpush1.bf16.msra.mxu0 %v1808
    %2366 = vmatprep.subr.bf16.mxu0 %v1801
    %2367 = vmatpush1.bf16.msra.mxu0 %v1800
    %2368 = vmatprep.subr.bf16.mxu0 %v1793
    %2369 = vmatpush1.bf16.msra.mxu0 %v1792
    %2370 = vmatprep.subr.bf16.mxu0 %v1785
    %2371 = vmatpush1.bf16.msra.mxu0 %v1784
    %2372 = vmatprep.subr.bf16.mxu0 %v1777
    %2373 = vmatpush1.bf16.msra.mxu0 %v1776
    %2374 = vmatprep.subr.bf16.mxu0 %v1769
    %2375 = vmatpush1.bf16.msra.mxu0 %v1768
    %2376 = vmatprep.subr.bf16.mxu0 %v1889
    %2377 = vmatpush2.bf16.msra.mxu0 %v1888
    %2378 = vmatprep.subr.bf16.mxu0 %v1881
    %2379 = vmatpush2.bf16.msra.mxu0 %v1880
    %2380 = vmatprep.subr.bf16.mxu0 %v1873
    %2381 = vmatpush2.bf16.msra.mxu0 %v1872
    %2382 = vmatprep.subr.bf16.mxu0 %v1865
    %2383 = vmatpush2.bf16.msra.mxu0 %v1864
    %2384 = vmatprep.subr.bf16.mxu0 %v1857
    %2385 = vmatpush2.bf16.msra.mxu0 %v1856
    %2386 = vmatprep.subr.bf16.mxu0 %v1849
    %2387 = vmatpush2.bf16.msra.mxu0 %v1848
    %2388 = vmatprep.subr.bf16.mxu0 %v1841
    %2389 = vmatpush2.bf16.msra.mxu0 %v1840
    %2390 = vmatprep.subr.bf16.mxu0 %v1833
    %2391 = vmatpush2.bf16.msra.mxu0 %v1832
    %2392 = vmatprep.mubr.bf16.mxu0 %v697
    %2393 = vmatmul.mubr.bf16.gmra.mxu0 %v696
    %v2394 = vpop.f32.mrf.mxu0
    %v2395 = vadd.f32 %v969, %v2394
    %v2396 = vpop.f32.mrf.mxu0
    %v2397 = vadd.f32 %v973, %v2396
    %v2398 = vpop.f32.mrf.mxu0
    %v2399 = vpop.f32.mrf.mxu0
    %2400 = vdwg.mxu0
    %2401 = vmatprep.subr.bf16.mxu0 %v1953
    %2402 = vmatpush1.bf16.msra.mxu0 %v1952
    %2403 = vmatprep.subr.bf16.mxu0 %v1945
    %2404 = vmatpush1.bf16.msra.mxu0 %v1944
    %2405 = vmatprep.subr.bf16.mxu0 %v1937
    %2406 = vmatpush1.bf16.msra.mxu0 %v1936
    %2407 = vmatprep.subr.bf16.mxu0 %v1929
    %2408 = vmatpush1.bf16.msra.mxu0 %v1928
    %2409 = vmatprep.subr.bf16.mxu0 %v1921
    %2410 = vmatpush1.bf16.msra.mxu0 %v1920
    %2411 = vmatprep.subr.bf16.mxu0 %v1913
    %2412 = vmatpush1.bf16.msra.mxu0 %v1912
    %2413 = vmatprep.subr.bf16.mxu0 %v1905
    %2414 = vmatpush1.bf16.msra.mxu0 %v1904
    %2415 = vmatprep.subr.bf16.mxu0 %v1897
    %2416 = vmatpush1.bf16.msra.mxu0 %v1896
    %2417 = vmatprep.subr.bf16.mxu0 %v2017
    %2418 = vmatpush2.bf16.msra.mxu0 %v2016
    %2419 = vmatprep.subr.bf16.mxu0 %v2009
    %2420 = vmatpush2.bf16.msra.mxu0 %v2008
    %2421 = vmatprep.subr.bf16.mxu0 %v2001
    %2422 = vmatpush2.bf16.msra.mxu0 %v2000
    %2423 = vmatprep.subr.bf16.mxu0 %v1993
    %2424 = vmatpush2.bf16.msra.mxu0 %v1992
    %2425 = vmatprep.subr.bf16.mxu0 %v1985
    %2426 = vmatpush2.bf16.msra.mxu0 %v1984
    %2427 = vmatprep.subr.bf16.mxu0 %v1977
    %2428 = vmatpush2.bf16.msra.mxu0 %v1976
    %2429 = vmatprep.subr.bf16.mxu0 %v1969
    %2430 = vmatpush2.bf16.msra.mxu0 %v1968
    %2431 = vmatprep.subr.bf16.mxu0 %v1961
    %2432 = vmatpush2.bf16.msra.mxu0 %v1960
    %2433 = vmatprep.mubr.bf16.mxu0 %v699
    %2434 = vmatmul.mubr.bf16.gmra.mxu0 %v698
    %v2435 = vpop.f32.mrf.mxu0
    %v2436 = vadd.f32 %v2395, %v2435
    %v2437 = vpop.f32.mrf.mxu0
    %v2438 = vadd.f32 %v2397, %v2437
    %v2439 = vpop.f32.mrf.mxu0
    %v2440 = vpop.f32.mrf.mxu0
    %2441 = vdwg.mxu0
    %2442 = vmatprep.subr.bf16.mxu0 %v1827
    %2443 = vmatpush1.bf16.msra.mxu0 %v1826
    %2444 = vmatprep.subr.bf16.mxu0 %v1819
    %2445 = vmatpush1.bf16.msra.mxu0 %v1818
    %2446 = vmatprep.subr.bf16.mxu0 %v1811
    %2447 = vmatpush1.bf16.msra.mxu0 %v1810
    %2448 = vmatprep.subr.bf16.mxu0 %v1803
    %2449 = vmatpush1.bf16.msra.mxu0 %v1802
    %2450 = vmatprep.subr.bf16.mxu0 %v1795
    %2451 = vmatpush1.bf16.msra.mxu0 %v1794
    %2452 = vmatprep.subr.bf16.mxu0 %v1787
    %2453 = vmatpush1.bf16.msra.mxu0 %v1786
    %2454 = vmatprep.subr.bf16.mxu0 %v1779
    %2455 = vmatpush1.bf16.msra.mxu0 %v1778
    %2456 = vmatprep.subr.bf16.mxu0 %v1771
    %2457 = vmatpush1.bf16.msra.mxu0 %v1770
    %2458 = vmatprep.subr.bf16.mxu0 %v1891
    %2459 = vmatpush2.bf16.msra.mxu0 %v1890
    %2460 = vmatprep.subr.bf16.mxu0 %v1883
    %2461 = vmatpush2.bf16.msra.mxu0 %v1882
    %2462 = vmatprep.subr.bf16.mxu0 %v1875
    %2463 = vmatpush2.bf16.msra.mxu0 %v1874
    %2464 = vmatprep.subr.bf16.mxu0 %v1867
    %2465 = vmatpush2.bf16.msra.mxu0 %v1866
    %2466 = vmatprep.subr.bf16.mxu0 %v1859
    %2467 = vmatpush2.bf16.msra.mxu0 %v1858
    %2468 = vmatprep.subr.bf16.mxu0 %v1851
    %2469 = vmatpush2.bf16.msra.mxu0 %v1850
    %2470 = vmatprep.subr.bf16.mxu0 %v1843
    %2471 = vmatpush2.bf16.msra.mxu0 %v1842
    %2472 = vmatprep.subr.bf16.mxu0 %v1835
    %2473 = vmatpush2.bf16.msra.mxu0 %v1834
    %2474 = vmatprep.mubr.bf16.mxu0 %v697
    %2475 = vmatmul.mubr.bf16.gmra.mxu0 %v696
    %v2476 = vpop.f32.mrf.mxu0
    %v2477 = vadd.f32 %v977, %v2476
    %v2478 = vpop.f32.mrf.mxu0
    %v2479 = vadd.f32 %v981, %v2478
    %v2480 = vpop.f32.mrf.mxu0
    %v2481 = vpop.f32.mrf.mxu0
    %2482 = vdwg.mxu0
    %2483 = vmatprep.subr.bf16.mxu0 %v1955
    %2484 = vmatpush1.bf16.msra.mxu0 %v1954
    %2485 = vmatprep.subr.bf16.mxu0 %v1947
    %2486 = vmatpush1.bf16.msra.mxu0 %v1946
    %2487 = vmatprep.subr.bf16.mxu0 %v1939
    %2488 = vmatpush1.bf16.msra.mxu0 %v1938
    %2489 = vmatprep.subr.bf16.mxu0 %v1931
    %2490 = vmatpush1.bf16.msra.mxu0 %v1930
    %2491 = vmatprep.subr.bf16.mxu0 %v1923
    %2492 = vmatpush1.bf16.msra.mxu0 %v1922
    %2493 = vmatprep.subr.bf16.mxu0 %v1915
    %2494 = vmatpush1.bf16.msra.mxu0 %v1914
    %2495 = vmatprep.subr.bf16.mxu0 %v1907
    %2496 = vmatpush1.bf16.msra.mxu0 %v1906
    %2497 = vmatprep.subr.bf16.mxu0 %v1899
    %2498 = vmatpush1.bf16.msra.mxu0 %v1898
    %2499 = vmatprep.subr.bf16.mxu0 %v2019
    %2500 = vmatpush2.bf16.msra.mxu0 %v2018
    %2501 = vmatprep.subr.bf16.mxu0 %v2011
    %2502 = vmatpush2.bf16.msra.mxu0 %v2010
    %2503 = vmatprep.subr.bf16.mxu0 %v2003
    %2504 = vmatpush2.bf16.msra.mxu0 %v2002
    %2505 = vmatprep.subr.bf16.mxu0 %v1995
    %2506 = vmatpush2.bf16.msra.mxu0 %v1994
    %2507 = vmatprep.subr.bf16.mxu0 %v1987
    %2508 = vmatpush2.bf16.msra.mxu0 %v1986
    %2509 = vmatprep.subr.bf16.mxu0 %v1979
    %2510 = vmatpush2.bf16.msra.mxu0 %v1978
    %2511 = vmatprep.subr.bf16.mxu0 %v1971
    %2512 = vmatpush2.bf16.msra.mxu0 %v1970
    %2513 = vmatprep.subr.bf16.mxu0 %v1963
    %2514 = vmatpush2.bf16.msra.mxu0 %v1962
    %2515 = vmatprep.mubr.bf16.mxu0 %v699
    %2516 = vmatmul.mubr.bf16.gmra.mxu0 %v698
    %v2517 = vpop.f32.mrf.mxu0
    %v2518 = vadd.f32 %v2477, %v2517
    %v2519 = vpop.f32.mrf.mxu0
    %v2520 = vadd.f32 %v2479, %v2519
    %v2521 = vpop.f32.mrf.mxu0
    %v2522 = vpop.f32.mrf.mxu0
    %2523 = vdwg.mxu0
    %2524 = vmatprep.subr.bf16.mxu0 %v1829
    %2525 = vmatpush1.bf16.msra.mxu0 %v1828
    %2526 = vmatprep.subr.bf16.mxu0 %v1821
    %2527 = vmatpush1.bf16.msra.mxu0 %v1820
    %2528 = vmatprep.subr.bf16.mxu0 %v1813
    %2529 = vmatpush1.bf16.msra.mxu0 %v1812
    %2530 = vmatprep.subr.bf16.mxu0 %v1805
    %2531 = vmatpush1.bf16.msra.mxu0 %v1804
    %2532 = vmatprep.subr.bf16.mxu0 %v1797
    %2533 = vmatpush1.bf16.msra.mxu0 %v1796
    %2534 = vmatprep.subr.bf16.mxu0 %v1789
    %2535 = vmatpush1.bf16.msra.mxu0 %v1788
    %2536 = vmatprep.subr.bf16.mxu0 %v1781
    %2537 = vmatpush1.bf16.msra.mxu0 %v1780
    %2538 = vmatprep.subr.bf16.mxu0 %v1773
    %2539 = vmatpush1.bf16.msra.mxu0 %v1772
    %2540 = vmatprep.subr.bf16.mxu0 %v1893
    %2541 = vmatpush2.bf16.msra.mxu0 %v1892
    %2542 = vmatprep.subr.bf16.mxu0 %v1885
    %2543 = vmatpush2.bf16.msra.mxu0 %v1884
    %2544 = vmatprep.subr.bf16.mxu0 %v1877
    %2545 = vmatpush2.bf16.msra.mxu0 %v1876
    %2546 = vmatprep.subr.bf16.mxu0 %v1869
    %2547 = vmatpush2.bf16.msra.mxu0 %v1868
    %2548 = vmatprep.subr.bf16.mxu0 %v1861
    %2549 = vmatpush2.bf16.msra.mxu0 %v1860
    %2550 = vmatprep.subr.bf16.mxu0 %v1853
    %2551 = vmatpush2.bf16.msra.mxu0 %v1852
    %2552 = vmatprep.subr.bf16.mxu0 %v1845
    %2553 = vmatpush2.bf16.msra.mxu0 %v1844
    %2554 = vmatprep.subr.bf16.mxu0 %v1837
    %2555 = vmatpush2.bf16.msra.mxu0 %v1836
    %2556 = vmatprep.mubr.bf16.mxu0 %v697
    %2557 = vmatmul.mubr.bf16.gmra.mxu0 %v696
    %v2558 = vpop.f32.mrf.mxu0
    %v2559 = vadd.f32 %v985, %v2558
    %v2560 = vpop.f32.mrf.mxu0
    %v2561 = vadd.f32 %v989, %v2560
    %v2562 = vpop.f32.mrf.mxu0
    %v2563 = vpop.f32.mrf.mxu0
    %2564 = vdwg.mxu0
    %2565 = vmatprep.subr.bf16.mxu0 %v1957
    %2566 = vmatpush1.bf16.msra.mxu0 %v1956
    %2567 = vmatprep.subr.bf16.mxu0 %v1949
    %2568 = vmatpush1.bf16.msra.mxu0 %v1948
    %2569 = vmatprep.subr.bf16.mxu0 %v1941
    %2570 = vmatpush1.bf16.msra.mxu0 %v1940
    %2571 = vmatprep.subr.bf16.mxu0 %v1933
    %2572 = vmatpush1.bf16.msra.mxu0 %v1932
    %2573 = vmatprep.subr.bf16.mxu0 %v1925
    %2574 = vmatpush1.bf16.msra.mxu0 %v1924
    %2575 = vmatprep.subr.bf16.mxu0 %v1917
    %2576 = vmatpush1.bf16.msra.mxu0 %v1916
    %2577 = vmatprep.subr.bf16.mxu0 %v1909
    %2578 = vmatpush1.bf16.msra.mxu0 %v1908
    %2579 = vmatprep.subr.bf16.mxu0 %v1901
    %2580 = vmatpush1.bf16.msra.mxu0 %v1900
    %2581 = vmatprep.subr.bf16.mxu0 %v2021
    %2582 = vmatpush2.bf16.msra.mxu0 %v2020
    %2583 = vmatprep.subr.bf16.mxu0 %v2013
    %2584 = vmatpush2.bf16.msra.mxu0 %v2012
    %2585 = vmatprep.subr.bf16.mxu0 %v2005
    %2586 = vmatpush2.bf16.msra.mxu0 %v2004
    %2587 = vmatprep.subr.bf16.mxu0 %v1997
    %2588 = vmatpush2.bf16.msra.mxu0 %v1996
    %2589 = vmatprep.subr.bf16.mxu0 %v1989
    %2590 = vmatpush2.bf16.msra.mxu0 %v1988
    %2591 = vmatprep.subr.bf16.mxu0 %v1981
    %2592 = vmatpush2.bf16.msra.mxu0 %v1980
    %2593 = vmatprep.subr.bf16.mxu0 %v1973
    %2594 = vmatpush2.bf16.msra.mxu0 %v1972
    %2595 = vmatprep.subr.bf16.mxu0 %v1965
    %2596 = vmatpush2.bf16.msra.mxu0 %v1964
    %2597 = vmatprep.mubr.bf16.mxu0 %v699
    %2598 = vmatmul.mubr.bf16.gmra.mxu0 %v698
    %v2599 = vpop.f32.mrf.mxu0
    %v2600 = vadd.f32 %v2559, %v2599
    %v2601 = vpop.f32.mrf.mxu0
    %v2602 = vadd.f32 %v2561, %v2601
    %v2603 = vpop.f32.mrf.mxu0
    %v2604 = vpop.f32.mrf.mxu0
    %2605 = vdwg.mxu0
    %v2606 = vmul.f32 %v2354, 0.01
    %v2607 = vmul.f32 %v2356, 0.01
    %v2608 = vmul.f32 %v2436, 0.01
    %v2609 = vmul.f32 %v2438, 0.01
    %v2610 = vmul.f32 %v2518, 0.01
    %v2611 = vmul.f32 %v2520, 0.01
    %v2612 = vmul.f32 %v2600, 0.01
    %v2613 = vmul.f32 %v2602, 0.01
    %v2614 = vmax.f32 %v2354, %v2606
    %v2615 = vmax.f32 %v2356, %v2607
    %v2616 = vmax.f32 %v2436, %v2608
    %v2617 = vmax.f32 %v2438, %v2609
    %v2618 = vmax.f32 %v2518, %v2610
    %v2619 = vmax.f32 %v2520, %v2611
    %v2620 = vmax.f32 %v2600, %v2612
    %v2621 = vmax.f32 %v2602, %v2613
    %v2622 = vld [vmem:[#allocation12] sm:$0xff]
    %v2623 = vunpack.c.l.bf16 %v2622
    %v2624 = vunpack.c.h.bf16 %v2622
    %v2627 = vlaneseq
    %v2628 = vshrl.u32 %v2627, 7
    %v2629 = vsub.s32 0, %v2628
    %v2630 = vrot.slane %v2623, %v2629
    %v2631 = vlaneseq
    %v2632 = vshrl.u32 %v2631, 7
    %v2633 = vsub.s32 2, %v2632
    %v2634 = vrot.slane %v2623, %v2633
    %v2635 = vlaneseq
    %v2636 = vshrl.u32 %v2635, 7
    %v2637 = vsub.s32 4, %v2636
    %v2638 = vrot.slane %v2623, %v2637
    %v2639 = vlaneseq
    %v2640 = vshrl.u32 %v2639, 7
    %v2641 = vsub.s32 6, %v2640
    %v2642 = vrot.slane %v2623, %v2641
    %v2643 = vlaneseq
    %v2644 = vshrl.u32 %v2643, 7
    %v2645 = vsub.s32 0, %v2644
    %v2646 = vrot.slane %v2624, %v2645
    %v2647 = vlaneseq
    %v2648 = vshrl.u32 %v2647, 7
    %v2649 = vsub.s32 2, %v2648
    %v2650 = vrot.slane %v2624, %v2649
    %v2651 = vlaneseq
    %v2652 = vshrl.u32 %v2651, 7
    %v2653 = vsub.s32 4, %v2652
    %v2654 = vrot.slane %v2624, %v2653
    %v2655 = vlaneseq
    %v2656 = vshrl.u32 %v2655, 7
    %v2657 = vsub.s32 6, %v2656
    %v2658 = vrot.slane %v2624, %v2657
    %v2667 = vlaneseq
    %v2668 = vshrl.u32 %v2667, 7
    %v2669 = vsub.s32 0, %v2668
    %v2670 = vrot.slane %v2630, %v2669
    %v2671 = vlaneseq
    %v2672 = vshrl.u32 %v2671, 7
    %v2673 = vsub.s32 0, %v2672
    %v2674 = vrot.slane %v2634, %v2673
    %v2675 = vlaneseq
    %v2676 = vshrl.u32 %v2675, 7
    %v2677 = vsub.s32 0, %v2676
    %v2678 = vrot.slane %v2638, %v2677
    %v2679 = vlaneseq
    %v2680 = vshrl.u32 %v2679, 7
    %v2681 = vsub.s32 0, %v2680
    %v2682 = vrot.slane %v2642, %v2681
    %v2683 = vlaneseq
    %v2684 = vshrl.u32 %v2683, 7
    %v2685 = vsub.s32 0, %v2684
    %v2686 = vrot.slane %v2646, %v2685
    %v2687 = vlaneseq
    %v2688 = vshrl.u32 %v2687, 7
    %v2689 = vsub.s32 0, %v2688
    %v2690 = vrot.slane %v2650, %v2689
    %v2691 = vlaneseq
    %v2692 = vshrl.u32 %v2691, 7
    %v2693 = vsub.s32 0, %v2692
    %v2694 = vrot.slane %v2654, %v2693
    %v2695 = vlaneseq
    %v2696 = vshrl.u32 %v2695, 7
    %v2697 = vsub.s32 0, %v2696
    %v2698 = vrot.slane %v2658, %v2697
    %v2699 = vmul.f32 %v2614, %v2670
    %v2700 = vmul.f32 %v2615, %v2674
    %v2701 = vmul.f32 %v2616, %v2678
    %v2702 = vmul.f32 %v2617, %v2682
    %v2703 = vmul.f32 %v2618, %v2686
    %v2704 = vmul.f32 %v2619, %v2690
    %v2705 = vmul.f32 %v2620, %v2694
    %v2706 = vmul.f32 %v2621, %v2698
    %v2707 = vadd.f32 %v2699, %v2700
    %v2708 = vadd.f32 %v2707, %v2701
    %v2709 = vadd.f32 %v2708, %v2702
    %v2710 = vadd.f32 %v2709, %v2703
    %v2711 = vadd.f32 %v2710, %v2704
    %v2712 = vadd.f32 %v2711, %v2705
    %v2713 = vadd.f32 %v2712, %v2706
    %2714 = vadd.xlane.f32.xlu0 %v2713
    %v2715 = vpop.xlane.xlu0 %2714
    %s2716 = sld [smem:[#allocation2]]
    %v2717 = vstv %s2716
    %v2718 = vadd.f32 %v2715, %v2717
    %2719 = vst [vmem:[#allocation14] sm:$0xff] %v2718
    // Predicated region
    $region62: #{tpu_custom_call.1} parent=1 // pred_check
      _
    $region63: #{tpu_custom_call.1} parent=1 // pred_check_branch
      %2721 = sbr.rel (0) target = $region65
    $region64: #{tpu_custom_call.1} parent=1 // pred_region
      %s2723 = ssub.s32 128, 128
      %2724 = vsyncadd [#allocation5], %s2723
      %s2726 = sshll.u32 [#allocation14], 4
      %s2727 = int_to_ptr.vmem [resolvable:$true] %s2726
      %2729 = dma.vmem_to_hbm [thread:$0]  %s2727, 128, %s9, [#allocation5]
    $region65: #{tpu_custom_call.1} parent=1 // pred_fallthru
      _
    // Predicated region
    $region66: #{tpu_custom_call.1} parent=1 // pred_check
      _
    $region67: #{tpu_custom_call.1} parent=1 // pred_check_branch
      %2731 = sbr.rel (0) target = $region69
    $region68: #{tpu_custom_call.1} parent=1 // pred_region
      %2732 = dma.done [#allocation5], 128
    $region69: #{tpu_custom_call.1} parent=1 // pred_fallthru
      _
    %2733 = vsyncpa [#allocation4], 1
    %2734 = vsyncpa [#allocation7], 1
    %2735 = vsyncpa [#allocation10], 1
    %2736 = vsyncpa [#allocation13], 1
    %2737 = vsyncpa [#allocation5], 1

</llo_original>
